<compile_context>
chip_gen: v7x
topology: tpu7x:2x2x1
jax: 0.10.0
libtpu: 0.0.40
codegen_flags: <defaults>
</compile_context>

<pallas_src>
import functools

import jax
import jax.numpy as jnp
import numpy as np
from jax.experimental import pallas as pl
from jax.experimental.pallas import tpu as pltpu

C_PAD = 128  # lane-dense padded width for every node-feature / glob channel dim


def _round_up(x, m):
    return (x + m - 1) // m * m


def _pad2(a, rows, cols):
    out = jnp.zeros((rows, cols), a.dtype)
    return out.at[: a.shape[0], : a.shape[1]].set(a)


# ----------------------------------------------------------------------------
# Fused kernel: all GCNConv_glob layers + inner ReLUs + final sigmoid.
#   grid = (n_layers, n_row_tiles)   (layer axis OUTER — required for carry)
#   a_hat is streamed in (tm, n_pad) bf16 row tiles (resident when nt == 1);
#   x1 (transformed features) is a 2-slot bf16 ping-pong scratch; graph_parts
#   is a cross-tile running max; the glob vector is carried between layers.
# ----------------------------------------------------------------------------
def gcn_glob_fused_kernel(
        a_ref, x1_init_ref, g0_ref,
        w_nn_nxt_ref, b_nn_ref, w_gn_ref, b_gn_ref,
        w_gg_ref, b_gg_ref, w_ng_ref, b_ng_ref,
        x_out_ref,
        x1_buf, m_acc, g_cur,
        *, n_valid, tm, n_layers):
    l = pl.program_id(0)
    t = pl.program_id(1)
    nt = pl.num_programs(1)
    last = n_layers - 1
    cur = l % 2          # slot holding this layer's x1
    nxt = 1 - cur        # slot being filled for the next layer

    # ---- very first grid step: load initial state ----
    @pl.when(jnp.logical_and(l == 0, t == 0))
    def _():
        x1_buf[0, :, :] = x1_init_ref[...]     # x@Wnn0 + b + glob0@Wgn0 + b (bf16)
        g_cur[...] = g0_ref[...]               # glob_init.repeat(1, 1)

    # ---- per-layer prologue (first row tile of each layer) ----
    @pl.when(jnp.logical_and(t == 0, l > 0))
    def _():
        # finish this layer's x1: add node bias + glob->node contribution
        addv = (b_nn_ref[...]
                + jnp.dot(g_cur[...], w_gn_ref[...],
                          preferred_element_type=jnp.float32)
                + b_gn_ref[...])
        x1_buf[cur, :, :] = (x1_buf[cur].astype(jnp.float32)
                             + addv).astype(jnp.bfloat16)

    @pl.when(jnp.logical_and(t == 0, l < last))
    def _():
        m_acc[...] = jnp.full(m_acc.shape, -jnp.inf, dtype=jnp.float32)

    # ---- propagate (aggr='add'):  x2 = A_hat[tile] @ x1   (bf16 MXU, f32 acc)
    x2 = jnp.dot(a_ref[...], x1_buf[cur], preferred_element_type=jnp.float32)

    row0 = pl.multiple_of(t * tm, tm)

    @pl.when(l < last)
    def _():
        # running max over real (non-padded) nodes -> graph_parts accumulator.
        # padded rows only exist in the last row tile.
        def upd_max(v):
            m_acc[...] = jnp.maximum(m_acc[...],
                                     jnp.max(v, axis=0, keepdims=True))

        @pl.when(t < nt - 1)
        def _():
            upd_max(x2)

        @pl.when(t == nt - 1)
        def _():
            rid = row0 + jax.lax.broadcasted_iota(jnp.int32, (tm, 1), 0)
            upd_max(jnp.where(rid < n_valid, x2, -jnp.inf))

        # fold the NEXT layer's node_to_node transform forward for this tile
        relu_x2 = jnp.maximum(x2, 0.0)
        part = jnp.dot(relu_x2, w_nn_nxt_ref[...],
                       preferred_element_type=jnp.float32)
        x1_buf[nxt, pl.ds(row0, tm), :] = part.astype(jnp.bfloat16)

    # ---- per-layer epilogue: glob update after the last row tile ----
    @pl.when(jnp.logical_and(t == nt - 1, l < last))
    def _():
        g_cur[...] = (jnp.dot(g_cur[...], w_gg_ref[...],
                              preferred_element_type=jnp.float32) + b_gg_ref[...]
                      + jnp.dot(m_acc[...], w_ng_ref[...],
                                preferred_element_type=jnp.float32) + b_ng_ref[...])

    # ---- last layer emits sigmoid(x2); earlier layers don't touch x_out ----
    @pl.when(l == last)
    def _():
        x_out_ref[...] = jax.nn.sigmoid(x2)


# ----------------------------------------------------------------------------
# Plain-JAX glue: sparse edge_index -> dense normalized adjacency.
# TODO(synk): data-dependent edge scatter/gather (add_self_loops, degree,
# deg^{-1/2}) has no clean Pallas TPU equivalent here; for large sparse graphs
# a scalar-prefetch gather-aggregate kernel should replace this dense path.
# ----------------------------------------------------------------------------
def build_norm_adj(edge_index, num_nodes):
    row, col = edge_index[0], edge_index[1]
    self_idx = jnp.arange(num_nodes, dtype=row.dtype)
    row = jnp.concatenate([row, self_idx])                        # add_self_loops
    col = jnp.concatenate([col, self_idx])
    deg = jnp.zeros((num_nodes,), jnp.float32).at[col].add(1.0)   # degree(col, N)
    dis = jnp.where(deg > 0, 1.0 / jnp.sqrt(deg), 0.0)            # inf -> 0
    norm = dis[row] * dis[col]
    # out[col] += norm * x[row]  <=>  A_hat[col, row] = norm ;  out = A_hat @ x
    return jnp.zeros((num_nodes, num_nodes), jnp.float32).at[col, row].add(norm)


def _stack_params(param_list):
    n_layers = len(param_list)
    zeros_w = jnp.zeros((C_PAD, C_PAD), jnp.float32)
    # W_nn shifted by one layer (fold-forward); dummy zeros for the last layer.
    w_nn_nxt = jnp.stack(
        [_pad2(param_list[l + 1]["w_nn"], C_PAD, C_PAD) if l + 1 < n_layers
         else zeros_w for l in range(n_layers)])

    def stk(name, r, c):
        return jnp.stack([_pad2(p[name], r, c) for p in param_list])

    return dict(
        w_nn_nxt=w_nn_nxt,
        b_nn=stk("b_nn", 1, C_PAD),
        w_gn=stk("w_gn", C_PAD, C_PAD), b_gn=stk("b_gn", 1, C_PAD),
        w_gg=stk("w_gg", C_PAD, C_PAD), b_gg=stk("b_gg", 1, C_PAD),
        w_ng=stk("w_ng", C_PAD, C_PAD), b_ng=stk("b_ng", 1, C_PAD))


def _choose_tiling(n):
    """Pick (n_pad, tm). Single row tile (a_hat resident across layers) when it
    fits a conservative VMEM budget, else 256-row streaming tiles."""
    n128 = _round_up(max(n, 8), 128)
    if n128 <= 2048:                 # n_pad^2 * 2B * 2 bufs <= 16 MiB
        return n128, n128
    tm = 256
    return _round_up(n, tm), tm


def _vmem_limit_bytes(n_pad, tm):
    need = (2 * tm * n_pad * 2            # a_hat tile (bf16), double-buffered
            + 2 * n_pad * C_PAD * 2       # x1_init input (bf16), 2 buffers
            + 2 * n_pad * C_PAD * 2       # x1 ping-pong scratch (bf16)
            + 2 * tm * C_PAD * 4          # output tile (f32), double-buffered
            + 2 * 8 * (C_PAD * C_PAD + C_PAD) * 4   # weights + biases
            + (2 << 20))                  # misc / compiler scratch headroom
    return int(min(max(need + (4 << 20), 32 << 20), 100 << 20))


# ----------------------------------------------------------------------------
# Full GCN_with_glob forward (single-graph `Data` path, num_graphs == 1).
# ----------------------------------------------------------------------------
def gcn_with_glob_forward(x, edge_index, param_list, glob_init, label_dim):
    n = x.shape[0]
    n_layers = len(param_list)

    n_pad, tm = _choose_tiling(n)
    n_tiles = n_pad // tm

    a_hat = build_norm_adj(edge_index, n)
    a_hat = _pad2(a_hat, n_pad, n_pad).astype(jnp.bfloat16)   # halve HBM bytes

    # layer-0 x1 precomputed (removes the in-kernel whole-graph t==0 matmul)
    p0 = param_list[0]
    x1_0 = x @ p0["w_nn"] + p0["b_nn"] + glob_init @ p0["w_gn"] + p0["b_gn"]
    x1_init = _pad2(x1_0, n_pad, C_PAD).astype(jnp.bfloat16)
    g_p = _pad2(glob_init, 1, C_PAD)

    sp = _stack_params(param_list)

    kernel = functools.partial(gcn_glob_fused_kernel,
                               n_valid=n, tm=tm, n_layers=n_layers)

    wspec = pl.BlockSpec((None, C_PAD, C_PAD), lambda l, t: (l, 0, 0))
    bspec = pl.BlockSpec((None, 1, C_PAD), lambda l, t: (l, 0, 0))

    a_stream = n_pad * n_pad * 2 * (1 if n_tiles == 1 else n_layers)
    cost = pl.CostEstimate(
        flops=(n_layers * 2 * n_pad * n_pad * C_PAD             # A_hat @ x1
               + (n_layers - 1) * 2 * n_pad * C_PAD * C_PAD     # relu @ W_nn
               + n_layers * 3 * 2 * C_PAD * C_PAD),             # glob matmuls
        transcendentals=n_pad * C_PAD,                          # final sigmoid
        bytes_accessed=(a_stream
                        + n_pad * C_PAD * 2                     # x1_init in
                        + n_pad * C_PAD * 4                     # out writeback
                        + n_layers * 8 * (C_PAD * C_PAD + C_PAD) * 4))

    x_out = pl.pallas_call(
        kernel,
        out_shape=jax.ShapeDtypeStruct((n_pad, C_PAD), jnp.float32),
        grid_spec=pltpu.PrefetchScalarGridSpec(
            num_scalar_prefetch=0,
            grid=(n_layers, n_tiles),
            in_specs=[
                pl.BlockSpec((tm, n_pad), lambda l, t: (t, 0)),      # a_hat tile
                pl.BlockSpec((n_pad, C_PAD), lambda l, t: (0, 0)),   # x1 layer 0
                pl.BlockSpec((1, C_PAD), lambda l, t: (0, 0)),       # glob_init
                wspec,                                               # W_nn (next layer)
                bspec,                                               # b_nn
                wspec, bspec,                                        # glob_to_node_lin
                wspec, bspec,                                        # glob_to_glob_lin
                wspec, bspec,                                        # node_to_glob_lin
            ],
            out_specs=pl.BlockSpec((tm, C_PAD), lambda l, t: (t, 0)),
            scratch_shapes=[
                pltpu.VMEM((2, n_pad, C_PAD), jnp.bfloat16),  # x1 ping-pong
                pltpu.VMEM((1, C_PAD), jnp.float32),          # running max (graph_parts)
                pltpu.VMEM((1, C_PAD), jnp.float32),          # current glob
            ],
        ),
        compiler_params=pltpu.CompilerParams(
            # both axes carry cross-step state (x1/m_acc/glob scratch):
            dimension_semantics=("arbitrary", "arbitrary"),
            vmem_limit_bytes=_vmem_limit_bytes(n_pad, tm)),
        cost_estimate=cost,
    )(a_hat, x1_init, g_p,
      sp["w_nn_nxt"], sp["b_nn"], sp["w_gn"], sp["b_gn"],
      sp["w_gg"], sp["b_gg"], sp["w_ng"], sp["b_ng"])

    return x_out[:n, :label_dim]


gcn_with_glob_forward_jit = jax.jit(gcn_with_glob_forward,
                                    static_argnames=("label_dim",))


# ----------------------------------------------------------------------------
# Parameter construction (deterministic, PyTorch-Linear-like shapes).
# ----------------------------------------------------------------------------
def make_linear(key, in_dim, out_dim):
    kw, kb = jax.random.split(key)
    bound = 1.0 / np.sqrt(in_dim)
    w = jax.random.uniform(kw, (in_dim, out_dim), jnp.float32, -bound, bound)
    b = jax.random.uniform(kb, (1, out_dim), jnp.float32, -bound, bound)
    return w, b


def make_conv_params(key, in_ch, out_ch, global_dim):
    k1, k2, k3, k4 = jax.random.split(key, 4)
    w_nn, b_nn = make_linear(k1, in_ch, out_ch)
    w_gn, b_gn = make_linear(k2, global_dim, out_ch)
    w_gg, b_gg = make_linear(k3, global_dim, global_dim)
    w_ng, b_ng = make_linear(k4, out_ch, global_dim)
    return dict(w_nn=w_nn, b_nn=b_nn, w_gn=w_gn, b_gn=b_gn,
                w_gg=w_gg, b_gg=b_gg, w_ng=w_ng, b_ng=b_ng)


# Pure-JAX reference mirroring the kernel's mixed precision (bf16 adjacency and
# bf16 x1 into the propagate matmul, f32 accumulation everywhere else).
def reference_forward(x, edge_index, param_list, glob_init):
    a = build_norm_adj(edge_index, x.shape[0]).astype(jnp.bfloat16)
    n_layers = len(param_list)
    g = glob_init
    p0 = param_list[0]
    x1 = x @ p0["w_nn"] + p0["b_nn"] + g @ p0["w_gn"] + p0["b_gn"]
    for l in range(n_layers):
        x1_bf = x1.astype(jnp.bfloat16)
        x2 = jnp.dot(a, x1_bf, preferred_element_type=jnp.float32)
        if l == n_layers - 1:
            return jax.nn.sigmoid(x2)
        p = param_list[l]
        gp = jnp.max(x2, axis=0, keepdims=True)
        g = (g @ p["w_gg"] + p["b_gg"]) + (gp @ p["w_ng"] + p["b_ng"])
        pn = param_list[l + 1]
        relu = jnp.maximum(x2, 0.0)
        part = (relu @ pn["w_nn"]).astype(jnp.bfloat16).astype(jnp.float32)
        x1 = part + pn["b_nn"] + g @ pn["w_gn"] + pn["b_gn"]


if __name__ == "__main__":
    num_node_features = 8
    label_dimension = 4
    conv_dim = 16
    global_dim = 16
    N = 32  # number of nodes in the (single) graph

    key = jax.random.PRNGKey(0)
    kx, kp1, kp2, kg = jax.random.split(key, 4)

    x = jax.random.normal(kx, (N, num_node_features), jnp.float32)

    # symmetric ring graph edges (both directions)
    src = np.arange(N, dtype=np.int32)
    dst = (src + 1) % N
    edge_index = jnp.asarray(
        np.stack([np.concatenate([src, dst]), np.concatenate([dst, src])]),
        jnp.int32)

    params = [make_conv_params(kp1, num_node_features, conv_dim, global_dim),
              make_conv_params(kp2, conv_dim, label_dimension, global_dim)]
    glob_init = jax.random.normal(kg, (1, global_dim), jnp.float32)

    out = gcn_with_glob_forward_jit(x, edge_index, params, glob_init,
                                    label_dim=label_dimension)
    out = jax.block_until_ready(out)

    ref = reference_forward(x, edge_index, params, glob_init)
    np.testing.assert_allclose(np.asarray(out), np.asarray(ref),
                               rtol=5e-3, atol=5e-3)

    print("KERNEL_OK")
</pallas_src>

<mosaic_0001>
module attributes {stable_mosaic.version = 11 : i64} {
  func.func private @main(%arg0: i32) attributes {dimension_semantics = [#tpu.dimension_semantics<core_parallel>], iteration_bounds = array<i64: 2>, tpu.core_type = #tpu.core_type<sc_scalar_subcore>, window_params = []} {
    return
  }
}

module attributes {stable_mosaic.version = 11 : i64} {
  func.func private @main(%arg0: i32) attributes {dimension_semantics = [#tpu.dimension_semantics<core_parallel>], iteration_bounds = array<i64: 2>, tpu.core_type = #tpu.core_type<sc_scalar_subcore>, window_params = []} {
    return
  }
}

module attributes {stable_mosaic.version = 11 : i64} {
  func.func @gcn_glob_fused_kernel(%arg0: i32, %arg1: i32, %arg2: memref<128x128xbf16, #tpu.memory_space<vmem>>, %arg3: memref<128x128xbf16, #tpu.memory_space<vmem>>, %arg4: memref<1x128xf32, #tpu.memory_space<vmem>>, %arg5: memref<1x128x128xf32, #tpu.memory_space<vmem>>, %arg6: memref<1x1x128xf32, #tpu.memory_space<vmem>>, %arg7: memref<1x128x128xf32, #tpu.memory_space<vmem>>, %arg8: memref<1x1x128xf32, #tpu.memory_space<vmem>>, %arg9: memref<1x128x128xf32, #tpu.memory_space<vmem>>, %arg10: memref<1x1x128xf32, #tpu.memory_space<vmem>>, %arg11: memref<1x128x128xf32, #tpu.memory_space<vmem>>, %arg12: memref<1x1x128xf32, #tpu.memory_space<vmem>>, %arg13: memref<128x128xf32, #tpu.memory_space<vmem>>, %arg14: memref<2x128x128xbf16, #tpu.memory_space<vmem>>, %arg15: memref<1x128xf32, #tpu.memory_space<vmem>>, %arg16: memref<1x128xf32, #tpu.memory_space<vmem>>) attributes {dimension_semantics = [#tpu.dimension_semantics<arbitrary>, #tpu.dimension_semantics<arbitrary>], iteration_bounds = array<i64: 2, 1>, scalar_prefetch = 0 : i64, scratch_operands = 3 : i64, tpu.core_type = #tpu.core_type<tc>, window_params = [{transform_indices = @transform_0, window_bounds = array<i64: 128, 128>}, {pipeline_mode = #tpu.pipeline_mode<synchronous>, transform_indices = @transform_1, window_bounds = array<i64: 128, 128>}, {pipeline_mode = #tpu.pipeline_mode<synchronous>, transform_indices = @transform_2, window_bounds = array<i64: 1, 128>}, {transform_indices = @transform_3, window_bounds = array<i64: 1, 128, 128>}, {transform_indices = @transform_4, window_bounds = array<i64: 1, 1, 128>}, {transform_indices = @transform_5, window_bounds = array<i64: 1, 128, 128>}, {transform_indices = @transform_6, window_bounds = array<i64: 1, 1, 128>}, {transform_indices = @transform_7, window_bounds = array<i64: 1, 128, 128>}, {transform_indices = @transform_8, window_bounds = array<i64: 1, 1, 128>}, {transform_indices = @transform_9, window_bounds = array<i64: 1, 128, 128>}, {transform_indices = @transform_10, window_bounds = array<i64: 1, 1, 128>}, {transform_indices = @transform_11, window_bounds = array<i64: 128, 128>}]} {
    %c2_i32 = arith.constant 2 : i32
    %c0_i32 = arith.constant 0 : i32
    %0 = arith.cmpi eq, %c2_i32, %c0_i32 : i32
    %c1_i32 = arith.constant 1 : i32
    %1 = arith.select %0, %c1_i32, %c2_i32 : i32
    %2 = arith.remsi %arg0, %1 : i32
    %c0_i32_0 = arith.constant 0 : i32
    %3 = arith.cmpi ne, %2, %c0_i32_0 : i32
    %c0_i32_1 = arith.constant 0 : i32
    %4 = arith.cmpi slt, %2, %c0_i32_1 : i32
    %c0_i32_2 = arith.constant 0 : i32
    %5 = arith.cmpi slt, %1, %c0_i32_2 : i32
    %6 = arith.xori %4, %5 : i1
    %7 = arith.andi %6, %3 : i1
    %8 = arith.addi %2, %1 : i32
    %9 = arith.select %7, %8, %2 : i32
    %c1_i32_3 = arith.constant 1 : i32
    %10 = arith.subi %c1_i32_3, %9 : i32
    %c0_i32_4 = arith.constant 0 : i32
    %11 = arith.cmpi eq, %arg0, %c0_i32_4 : i32
    %c0_i32_5 = arith.constant 0 : i32
    %12 = arith.cmpi eq, %arg1, %c0_i32_5 : i32
    %13 = arith.andi %11, %12 : i1
    %14 = arith.extui %13 : i1 to i32
    %c0_i32_6 = arith.constant 0 : i32
    %15 = arith.cmpi ne, %14, %c0_i32_6 : i32
    scf.if %15 {
      %c0_23 = arith.constant 0 : index
      %c0_24 = arith.constant 0 : index
      %44 = vector.load %arg3[%c0_23, %c0_24] : memref<128x128xbf16, #tpu.memory_space<vmem>>, vector<128x128xbf16>
      %c0_25 = arith.constant 0 : index
      %c0_26 = arith.constant 0 : index
      %c0_27 = arith.constant 0 : index
      %45 = vector.load %arg14[%c0_25, %c0_26, %c0_27] : memref<2x128x128xbf16, #tpu.memory_space<vmem>>, vector<1x128x128xbf16>
      %46 = vector.shape_cast %45 : vector<1x128x128xbf16> to vector<128x128xbf16>
      %47 = vector.shape_cast %44 : vector<128x128xbf16> to vector<1x128x128xbf16>
      tpu.vector_store %arg14[%c0_25, %c0_26, %c0_27], %47 {strides = array<i32>} : memref<2x128x128xbf16, #tpu.memory_space<vmem>>, vector<1x128x128xbf16>,
      %c0_28 = arith.constant 0 : index
      %c0_29 = arith.constant 0 : index
      %48 = vector.load %arg4[%c0_28, %c0_29] : memref<1x128xf32, #tpu.memory_space<vmem>>, vector<1x128xf32>
      %c0_30 = arith.constant 0 : index
      %c0_31 = arith.constant 0 : index
      %49 = vector.load %arg16[%c0_30, %c0_31] : memref<1x128xf32, #tpu.memory_space<vmem>>, vector<1x128xf32>
      tpu.vector_store %arg16[%c0_30, %c0_31], %48 {strides = array<i32>} : memref<1x128xf32, #tpu.memory_space<vmem>>, vector<1x128xf32>,
    } else {
    }
    %c0_i32_7 = arith.constant 0 : i32
    %16 = arith.cmpi eq, %arg1, %c0_i32_7 : i32
    %c0_i32_8 = arith.constant 0 : i32
    %17 = arith.cmpi sgt, %arg0, %c0_i32_8 : i32
    %18 = arith.andi %16, %17 : i1
    %19 = arith.extui %18 : i1 to i32
    %c0_i32_9 = arith.constant 0 : i32
    %20 = arith.cmpi ne, %19, %c0_i32_9 : i32
    scf.if %20 {
      %c0_23 = arith.constant 0 : index
      %c0_24 = arith.constant 0 : index
      %c0_25 = arith.constant 0 : index
      %44 = vector.load %arg6[%c0_23, %c0_24, %c0_25] : memref<1x1x128xf32, #tpu.memory_space<vmem>>, vector<1x1x128xf32>
      %45 = vector.shape_cast %44 : vector<1x1x128xf32> to vector<1x128xf32>
      %c0_26 = arith.constant 0 : index
      %c0_27 = arith.constant 0 : index
      %46 = vector.load %arg16[%c0_26, %c0_27] : memref<1x128xf32, #tpu.memory_space<vmem>>, vector<1x128xf32>
      %c0_28 = arith.constant 0 : index
      %c0_29 = arith.constant 0 : index
      %c0_30 = arith.constant 0 : index
      %47 = vector.load %arg7[%c0_28, %c0_29, %c0_30] : memref<1x128x128xf32, #tpu.memory_space<vmem>>, vector<1x128x128xf32>
      %48 = vector.shape_cast %47 : vector<1x128x128xf32> to vector<128x128xf32>
      %cst_31 = arith.constant dense<0.000000e+00> : vector<1x128xf32>
      %49 = tpu.matmul %46, %48, %cst_31 {dimension_numbers = #tpu.dot_dimension_numbers<[1], [0], [0], [1], [0, 0, 1, 1], [], []>} : vector<1x128xf32>, vector<128x128xf32>, vector<1x128xf32> -> vector<1x128xf32>
      %50 = arith.addf %45, %49 : vector<1x128xf32>
      %c0_32 = arith.constant 0 : index
      %c0_33 = arith.constant 0 : index
      %c0_34 = arith.constant 0 : index
      %51 = vector.load %arg8[%c0_32, %c0_33, %c0_34] : memref<1x1x128xf32, #tpu.memory_space<vmem>>, vector<1x1x128xf32>
      %52 = vector.shape_cast %51 : vector<1x1x128xf32> to vector<1x128xf32>
      %53 = arith.addf %50, %52 : vector<1x128xf32>
      %54 = arith.index_cast %9 : i32 to index
      %c0_35 = arith.constant 0 : index
      %c0_36 = arith.constant 0 : index
      %55 = vector.load %arg14[%54, %c0_35, %c0_36] : memref<2x128x128xbf16, #tpu.memory_space<vmem>>, vector<1x128x128xbf16>
      %56 = vector.shape_cast %55 : vector<1x128x128xbf16> to vector<128x128xbf16>
      %57 = arith.extf %56 : vector<128x128xbf16> to vector<128x128xf32>
      %58 = vector.broadcast %53 : vector<1x128xf32> to vector<128x128xf32>
      %59 = arith.addf %57, %58 : vector<128x128xf32>
      %60 = arith.truncf %59 : vector<128x128xf32> to vector<128x128xbf16>
      %61 = arith.index_cast %9 : i32 to index
      %c0_37 = arith.constant 0 : index
      %c0_38 = arith.constant 0 : index
      %62 = vector.load %arg14[%61, %c0_37, %c0_38] : memref<2x128x128xbf16, #tpu.memory_space<vmem>>, vector<1x128x128xbf16>
      %63 = vector.shape_cast %62 : vector<1x128x128xbf16> to vector<128x128xbf16>
      %64 = vector.shape_cast %60 : vector<128x128xbf16> to vector<1x128x128xbf16>
      tpu.vector_store %arg14[%61, %c0_37, %c0_38], %64 {strides = array<i32>} : memref<2x128x128xbf16, #tpu.memory_space<vmem>>, vector<1x128x128xbf16>,
    } else {
    }
    %c0_i32_10 = arith.constant 0 : i32
    %21 = arith.cmpi eq, %arg1, %c0_i32_10 : i32
    %c1_i32_11 = arith.constant 1 : i32
    %22 = arith.cmpi slt, %arg0, %c1_i32_11 : i32
    %23 = arith.andi %21, %22 : i1
    %24 = arith.extui %23 : i1 to i32
    %c0_i32_12 = arith.constant 0 : i32
    %25 = arith.cmpi ne, %24, %c0_i32_12 : i32
    scf.if %25 {
      %cst_23 = arith.constant 0xFF800000 : f32
      %44 = vector.broadcast %cst_23 : f32 to vector<1x128xf32>
      %c0_24 = arith.constant 0 : index
      %c0_25 = arith.constant 0 : index
      %45 = vector.load %arg15[%c0_24, %c0_25] : memref<1x128xf32, #tpu.memory_space<vmem>>, vector<1x128xf32>
      tpu.vector_store %arg15[%c0_24, %c0_25], %44 {strides = array<i32>} : memref<1x128xf32, #tpu.memory_space<vmem>>, vector<1x128xf32>,
    } else {
    }
    %c0 = arith.constant 0 : index
    %c0_13 = arith.constant 0 : index
    %26 = vector.load %arg2[%c0, %c0_13] : memref<128x128xbf16, #tpu.memory_space<vmem>>, vector<128x128xbf16>
    %27 = arith.index_cast %9 : i32 to index
    %c0_14 = arith.constant 0 : index
    %c0_15 = arith.constant 0 : index
    %28 = vector.load %arg14[%27, %c0_14, %c0_15] : memref<2x128x128xbf16, #tpu.memory_space<vmem>>, vector<1x128x128xbf16>
    %29 = vector.shape_cast %28 : vector<1x128x128xbf16> to vector<128x128xbf16>
    %cst = arith.constant dense<0.000000e+00> : vector<128x128xf32>
    %30 = tpu.matmul %26, %29, %cst {dimension_numbers = #tpu.dot_dimension_numbers<[1], [0], [0], [1], [0, 0, 1, 1], [], []>} : vector<128x128xbf16>, vector<128x128xbf16>, vector<128x128xf32> -> vector<128x128xf32>
    %c128_i32 = arith.constant 128 : i32
    %31 = arith.muli %arg1, %c128_i32 : i32
    %32 = tpu.assume_multiple %31, 128 : i32
    %c1_i32_16 = arith.constant 1 : i32
    %33 = arith.cmpi slt, %arg0, %c1_i32_16 : i32
    %34 = arith.extui %33 : i1 to i32
    %c0_i32_17 = arith.constant 0 : i32
    %35 = arith.cmpi ne, %34, %c0_i32_17 : i32
    scf.if %35 {
      %c0_i32_23 = arith.constant 0 : i32
      %44 = arith.cmpi slt, %arg1, %c0_i32_23 : i32
      %45 = arith.extui %44 : i1 to i32
      %c0_i32_24 = arith.constant 0 : i32
      %46 = arith.cmpi ne, %45, %c0_i32_24 : i32
      scf.if %46 {
        %c0_33 = arith.constant 0 : index
        %c0_34 = arith.constant 0 : index
        %61 = vector.load %arg15[%c0_33, %c0_34] : memref<1x128xf32, #tpu.memory_space<vmem>>, vector<1x128xf32>
        %cst_35 = arith.constant dense<0xFF800000> : vector<128xf32>
        %62 = vector.multi_reduction <maximumf>, %30, %cst_35 [0] : vector<128x128xf32> to vector<128xf32>
        %63 = vector.shape_cast %62 : vector<128xf32> to vector<1x128xf32>
        %64 = arith.maximumf %61, %63 : vector<1x128xf32>
        %c0_36 = arith.constant 0 : index
        %c0_37 = arith.constant 0 : index
        %65 = vector.load %arg15[%c0_36, %c0_37] : memref<1x128xf32, #tpu.memory_space<vmem>>, vector<1x128xf32>
        tpu.vector_store %arg15[%c0_36, %c0_37], %64 {strides = array<i32>} : memref<1x128xf32, #tpu.memory_space<vmem>>, vector<1x128xf32>,
      } else {
      }
      %c0_i32_25 = arith.constant 0 : i32
      %47 = arith.cmpi eq, %arg1, %c0_i32_25 : i32
      %48 = arith.extui %47 : i1 to i32
      %c0_i32_26 = arith.constant 0 : i32
      %49 = arith.cmpi ne, %48, %c0_i32_26 : i32
      scf.if %49 {
        %61 = tpu.iota {dimensions = array<i32: 0>} : vector<128x1xi32>
        %62 = vector.broadcast %32 : i32 to vector<128x1xi32>
        %63 = arith.addi %62, %61 : vector<128x1xi32>
        %c32_i32 = arith.constant 32 : i32
        %64 = vector.broadcast %c32_i32 : i32 to vector<128x1xi32>
        %65 = arith.cmpi slt, %63, %64 : vector<128x1xi32>
        %cst_33 = arith.constant 0xFF800000 : f32
        %66 = vector.shape_cast %65 : vector<128x1xi1> to vector<128x1xi1>
        %67 = vector.broadcast %66 : vector<128x1xi1> to vector<128x128xi1>
        %68 = vector.broadcast %cst_33 : f32 to vector<128x128xf32>
        %69 = arith.select %67, %30, %68 : vector<128x128xi1>, vector<128x128xf32>
        %c0_34 = arith.constant 0 : index
        %c0_35 = arith.constant 0 : index
        %70 = vector.load %arg15[%c0_34, %c0_35] : memref<1x128xf32, #tpu.memory_space<vmem>>, vector<1x128xf32>
        %cst_36 = arith.constant dense<0xFF800000> : vector<128xf32>
        %71 = vector.multi_reduction <maximumf>, %69, %cst_36 [0] : vector<128x128xf32> to vector<128xf32>
        %72 = vector.shape_cast %71 : vector<128xf32> to vector<1x128xf32>
        %73 = arith.maximumf %70, %72 : vector<1x128xf32>
        %c0_37 = arith.constant 0 : index
        %c0_38 = arith.constant 0 : index
        %74 = vector.load %arg15[%c0_37, %c0_38] : memref<1x128xf32, #tpu.memory_space<vmem>>, vector<1x128xf32>
        tpu.vector_store %arg15[%c0_37, %c0_38], %73 {strides = array<i32>} : memref<1x128xf32, #tpu.memory_space<vmem>>, vector<1x128xf32>,
      } else {
      }
      %cst_27 = arith.constant 0.000000e+00 : f32
      %50 = vector.broadcast %cst_27 : f32 to vector<128x128xf32>
      %51 = arith.maximumf %30, %50 : vector<128x128xf32>
      %c0_28 = arith.constant 0 : index
      %c0_29 = arith.constant 0 : index
      %c0_30 = arith.constant 0 : index
      %52 = vector.load %arg5[%c0_28, %c0_29, %c0_30] : memref<1x128x128xf32, #tpu.memory_space<vmem>>, vector<1x128x128xf32>
      %53 = vector.shape_cast %52 : vector<1x128x128xf32> to vector<128x128xf32>
      %cst_31 = arith.constant dense<0.000000e+00> : vector<128x128xf32>
      %54 = tpu.matmul %51, %53, %cst_31 {dimension_numbers = #tpu.dot_dimension_numbers<[1], [0], [0], [1], [0, 0, 1, 1], [], []>} : vector<128x128xf32>, vector<128x128xf32>, vector<128x128xf32> -> vector<128x128xf32>
      %55 = arith.truncf %54 : vector<128x128xf32> to vector<128x128xbf16>
      %56 = arith.index_cast %10 : i32 to index
      %57 = arith.index_cast %32 : i32 to index
      %c0_32 = arith.constant 0 : index
      %58 = vector.load %arg14[%56, %57, %c0_32] : memref<2x128x128xbf16, #tpu.memory_space<vmem>>, vector<1x128x128xbf16>
      %59 = vector.shape_cast %58 : vector<1x128x128xbf16> to vector<128x128xbf16>
      %60 = vector.shape_cast %55 : vector<128x128xbf16> to vector<1x128x128xbf16>
      tpu.vector_store %arg14[%56, %57, %c0_32], %60 {strides = array<i32>} : memref<2x128x128xbf16, #tpu.memory_space<vmem>>, vector<1x128x128xbf16>,
    } else {
    }
    %c0_i32_18 = arith.constant 0 : i32
    %36 = arith.cmpi eq, %arg1, %c0_i32_18 : i32
    %c1_i32_19 = arith.constant 1 : i32
    %37 = arith.cmpi slt, %arg0, %c1_i32_19 : i32
    %38 = arith.andi %36, %37 : i1
    %39 = arith.extui %38 : i1 to i32
    %c0_i32_20 = arith.constant 0 : i32
    %40 = arith.cmpi ne, %39, %c0_i32_20 : i32
    scf.if %40 {
      %c0_23 = arith.constant 0 : index
      %c0_24 = arith.constant 0 : index
      %44 = vector.load %arg16[%c0_23, %c0_24] : memref<1x128xf32, #tpu.memory_space<vmem>>, vector<1x128xf32>
      %c0_25 = arith.constant 0 : index
      %c0_26 = arith.constant 0 : index
      %c0_27 = arith.constant 0 : index
      %45 = vector.load %arg9[%c0_25, %c0_26, %c0_27] : memref<1x128x128xf32, #tpu.memory_space<vmem>>, vector<1x128x128xf32>
      %46 = vector.shape_cast %45 : vector<1x128x128xf32> to vector<128x128xf32>
      %cst_28 = arith.constant dense<0.000000e+00> : vector<1x128xf32>
      %47 = tpu.matmul %44, %46, %cst_28 {dimension_numbers = #tpu.dot_dimension_numbers<[1], [0], [0], [1], [0, 0, 1, 1], [], []>} : vector<1x128xf32>, vector<128x128xf32>, vector<1x128xf32> -> vector<1x128xf32>
      %c0_29 = arith.constant 0 : index
      %c0_30 = arith.constant 0 : index
      %c0_31 = arith.constant 0 : index
      %48 = vector.load %arg10[%c0_29, %c0_30, %c0_31] : memref<1x1x128xf32, #tpu.memory_space<vmem>>, vector<1x1x128xf32>
      %49 = vector.shape_cast %48 : vector<1x1x128xf32> to vector<1x128xf32>
      %50 = arith.addf %47, %49 : vector<1x128xf32>
      %c0_32 = arith.constant 0 : index
      %c0_33 = arith.constant 0 : index
      %51 = vector.load %arg15[%c0_32, %c0_33] : memref<1x128xf32, #tpu.memory_space<vmem>>, vector<1x128xf32>
      %c0_34 = arith.constant 0 : index
      %c0_35 = arith.constant 0 : index
      %c0_36 = arith.constant 0 : index
      %52 = vector.load %arg11[%c0_34, %c0_35, %c0_36] : memref<1x128x128xf32, #tpu.memory_space<vmem>>, vector<1x128x128xf32>
      %53 = vector.shape_cast %52 : vector<1x128x128xf32> to vector<128x128xf32>
      %cst_37 = arith.constant dense<0.000000e+00> : vector<1x128xf32>
      %54 = tpu.matmul %51, %53, %cst_37 {dimension_numbers = #tpu.dot_dimension_numbers<[1], [0], [0], [1], [0, 0, 1, 1], [], []>} : vector<1x128xf32>, vector<128x128xf32>, vector<1x128xf32> -> vector<1x128xf32>
      %55 = arith.addf %50, %54 : vector<1x128xf32>
      %c0_38 = arith.constant 0 : index
      %c0_39 = arith.constant 0 : index
      %c0_40 = arith.constant 0 : index
      %56 = vector.load %arg12[%c0_38, %c0_39, %c0_40] : memref<1x1x128xf32, #tpu.memory_space<vmem>>, vector<1x1x128xf32>
      %57 = vector.shape_cast %56 : vector<1x1x128xf32> to vector<1x128xf32>
      %58 = arith.addf %55, %57 : vector<1x128xf32>
      %c0_41 = arith.constant 0 : index
      %c0_42 = arith.constant 0 : index
      %59 = vector.load %arg16[%c0_41, %c0_42] : memref<1x128xf32, #tpu.memory_space<vmem>>, vector<1x128xf32>
      tpu.vector_store %arg16[%c0_41, %c0_42], %58 {strides = array<i32>} : memref<1x128xf32, #tpu.memory_space<vmem>>, vector<1x128xf32>,
    } else {
    }
    %c1_i32_21 = arith.constant 1 : i32
    %41 = arith.cmpi eq, %arg0, %c1_i32_21 : i32
    %42 = arith.extui %41 : i1 to i32
    %c0_i32_22 = arith.constant 0 : i32
    %43 = arith.cmpi ne, %42, %c0_i32_22 : i32
    scf.if %43 {
      %44 = arith.negf %30 : vector<128x128xf32>
      %45 = math.exp %44 : vector<128x128xf32>
      %cst_23 = arith.constant 1.000000e+00 : f32
      %46 = vector.broadcast %cst_23 : f32 to vector<128x128xf32>
      %47 = arith.addf %46, %45 : vector<128x128xf32>
      %48 = arith.divf %46, %47 : vector<128x128xf32>
      %c0_24 = arith.constant 0 : index
      %c0_25 = arith.constant 0 : index
      %49 = vector.load %arg13[%c0_24, %c0_25] : memref<128x128xf32, #tpu.memory_space<vmem>>, vector<128x128xf32>
      tpu.vector_store %arg13[%c0_24, %c0_25], %48 {strides = array<i32>} : memref<128x128xf32, #tpu.memory_space<vmem>>, vector<128x128xf32>,
    } else {
    }
    return
  }
  func.func @transform_0(%arg0: i32, %arg1: i32) -> (i32, i32) {
    %c0_i32 = arith.constant 0 : i32
    %c0_i32_0 = arith.constant 0 : i32
    return %arg1, %c0_i32 : i32, i32
  }
  func.func @transform_1(%arg0: i32, %arg1: i32) -> (i32, i32) {
    %c0_i32 = arith.constant 0 : i32
    %c0_i32_0 = arith.constant 0 : i32
    %c0_i32_1 = arith.constant 0 : i32
    return %c0_i32, %c0_i32_0 : i32, i32
  }
  func.func @transform_2(%arg0: i32, %arg1: i32) -> (i32, i32) {
    %c0_i32 = arith.constant 0 : i32
    %c0_i32_0 = arith.constant 0 : i32
    %c0_i32_1 = arith.constant 0 : i32
    return %c0_i32, %c0_i32_0 : i32, i32
  }
  func.func @transform_3(%arg0: i32, %arg1: i32) -> (i32, i32, i32) {
    %c0_i32 = arith.constant 0 : i32
    %c0_i32_0 = arith.constant 0 : i32
    %c0_i32_1 = arith.constant 0 : i32
    return %arg0, %c0_i32, %c0_i32_0 : i32, i32, i32
  }
  func.func @transform_4(%arg0: i32, %arg1: i32) -> (i32, i32, i32) {
    %c0_i32 = arith.constant 0 : i32
    %c0_i32_0 = arith.constant 0 : i32
    %c0_i32_1 = arith.constant 0 : i32
    return %arg0, %c0_i32, %c0_i32_0 : i32, i32, i32
  }
  func.func @transform_5(%arg0: i32, %arg1: i32) -> (i32, i32, i32) {
    %c0_i32 = arith.constant 0 : i32
    %c0_i32_0 = arith.constant 0 : i32
    %c0_i32_1 = arith.constant 0 : i32
    return %arg0, %c0_i32, %c0_i32_0 : i32, i32, i32
  }
  func.func @transform_6(%arg0: i32, %arg1: i32) -> (i32, i32, i32) {
    %c0_i32 = arith.constant 0 : i32
    %c0_i32_0 = arith.constant 0 : i32
    %c0_i32_1 = arith.constant 0 : i32
    return %arg0, %c0_i32, %c0_i32_0 : i32, i32, i32
  }
  func.func @transform_7(%arg0: i32, %arg1: i32) -> (i32, i32, i32) {
    %c0_i32 = arith.constant 0 : i32
    %c0_i32_0 = arith.constant 0 : i32
    %c0_i32_1 = arith.constant 0 : i32
    return %arg0, %c0_i32, %c0_i32_0 : i32, i32, i32
  }
  func.func @transform_8(%arg0: i32, %arg1: i32) -> (i32, i32, i32) {
    %c0_i32 = arith.constant 0 : i32
    %c0_i32_0 = arith.constant 0 : i32
    %c0_i32_1 = arith.constant 0 : i32
    return %arg0, %c0_i32, %c0_i32_0 : i32, i32, i32
  }
  func.func @transform_9(%arg0: i32, %arg1: i32) -> (i32, i32, i32) {
    %c0_i32 = arith.constant 0 : i32
    %c0_i32_0 = arith.constant 0 : i32
    %c0_i32_1 = arith.constant 0 : i32
    return %arg0, %c0_i32, %c0_i32_0 : i32, i32, i32
  }
  func.func @transform_10(%arg0: i32, %arg1: i32) -> (i32, i32, i32) {
    %c0_i32 = arith.constant 0 : i32
    %c0_i32_0 = arith.constant 0 : i32
    %c0_i32_1 = arith.constant 0 : i32
    return %arg0, %c0_i32, %c0_i32_0 : i32, i32, i32
  }
  func.func @transform_11(%arg0: i32, %arg1: i32) -> (i32, i32) {
    %c0_i32 = arith.constant 0 : i32
    %c0_i32_0 = arith.constant 0 : i32
    return %arg1, %c0_i32 : i32, i32
  }
}

</mosaic_0001>

<llo_original>
// kernel: mul.1
$region0: #{mul.1}
  #allocation0 [shape = 's32[1]{0}', space=sflag, size = 0x4, scoped, tag = 'scoped memory for mul.1']
  %s0 = inlined_call_operand.vmem [shape: f32[96], index: 0, kind: input, shape index: {}]
  %s1 = inlined_call_operand.vmem [shape: f32[96], index: 1, kind: input, shape index: {}]
  %s2 = inlined_call_operand.vmem [shape: f32[96], index: 2, kind: output, shape index: {}]
  %v3 = vld [vmem:[%s0] sm:$0x1]
  %v4 = vld [vmem:[%s1] sm:$0x1]
  %5 = xla_tuple %v3, %v4
  %6 = xla_tuple %5
  %v7 = vmul.f32 %v3, %v4
  %8 = xla_tuple %v7
  %9 = vst [vmem:[%s2] sm:$0x1] %v7

// kernel: gcn_with_glob_forward.1
$region0: #{gcn_with_glob_forward.1}
  #allocation0 [shape = 'u32[]', space=smem, size = 0x4, offset = 0x4, fixed_abs, tag = 'smem constant byte address 0x4 - core index']
  #allocation1 [shape = 'u32[144,128]{1,0:T(1,128)}', space=vmem, size = 0x12000, scoped, tag = 'internal scratch']
  #allocation2 [shape = 'bf16[2,128,128]{2,1,0:T(16,128)(2,1)}', space=vmem, size = 0x10000, scoped, tag = 'scratch operand']
  #allocation3 [shape = 'f32[1,128]{1,0:T(1,128)}', space=vmem, size = 0x200, scoped, tag = 'scratch operand']
  #allocation4 [shape = 'f32[1,128]{1,0:T(1,128)}', space=vmem, size = 0x200, scoped, tag = 'scratch operand']
  %s0 = inlined_call_operand.vmem [shape: bf16[128,128], index: 0, kind: input, shape index: {}]
  %s1 = inlined_call_operand.vmem [shape: bf16[128,128], index: 1, kind: input, shape index: {}]
  %s2 = inlined_call_operand.vmem [shape: f32[1,128], index: 2, kind: input, shape index: {}]
  %s3 = inlined_call_operand.vmem [shape: f32[2,128,128], index: 3, kind: input, shape index: {}]
  %s4 = inlined_call_operand.vmem [shape: f32[2,1,128], index: 4, kind: input, shape index: {}]
  %s5 = inlined_call_operand.vmem [shape: f32[2,128,128], index: 5, kind: input, shape index: {}]
  %s6 = inlined_call_operand.vmem [shape: f32[2,1,128], index: 6, kind: input, shape index: {}]
  %s7 = inlined_call_operand.vmem [shape: f32[2,128,128], index: 7, kind: input, shape index: {}]
  %s8 = inlined_call_operand.vmem [shape: f32[2,1,128], index: 8, kind: input, shape index: {}]
  %s9 = inlined_call_operand.vmem [shape: f32[2,128,128], index: 9, kind: input, shape index: {}]
  %s10 = inlined_call_operand.vmem [shape: f32[2,1,128], index: 10, kind: input, shape index: {}]
  %s11 = inlined_call_operand.vmem [shape: f32[128,128], index: 11, kind: output, shape index: {}]
  %s12 = sld [smem:[#allocation0]]
  $region109: #{gcn_with_glob_forward.1} parent=0
    _
  %s14 = ssub.s32 1, %s12
  %s15 = scalar_select 0, %s14, %s12
  loop: start=0, step=1, limit=4
  $region2: #{gcn_with_glob_forward.1} parent=0 // loop_pre_header
    _
  $region3: #{gcn_with_glob_forward.1} parent=0 // loop_header
    %s17 = sphi 0, %s21
    %p18 = scmp.ge.s32.totalorder %s17, 4
    %s24 = sphi 0, %s36
    %s25 = sphi 0, %s32
    %s26 = sphi 0, %s24
    %s27 = sphi 0, %s25
    %s28 = sphi 0, %s26
    %s29 = sphi 0, %s27
    %s39 = sphi 0, %s41
    %s42 = sphi 0, %s39
    %s43 = sphi 0, %s42
    %s59 = sphi 0, %s43
    %s63 = sphi 0, %s63
    %s65 = sphi 0, %s63
    %s66 = sphi 0, %s65
    %s80 = sphi 0, %s66
    %s84 = sphi 0, %s84
    %s86 = sphi 0, %s84
    %s87 = sphi 0, %s86
    %s101 = sphi 0, %s87
    %s107 = sphi 0, %s109
    %s110 = sphi 0, %s107
    %s111 = sphi 0, %s110
    %s127 = sphi 0, %s111
    %s133 = sphi 0, %s135
    %s136 = sphi 0, %s133
    %s137 = sphi 0, %s136
    %s153 = sphi 0, %s137
    %s159 = sphi 0, %s161
    %s162 = sphi 0, %s159
    %s163 = sphi 0, %s162
    %s179 = sphi 0, %s163
    %s185 = sphi 0, %s187
    %s188 = sphi 0, %s185
    %s189 = sphi 0, %s188
    %s205 = sphi 0, %s189
    %s211 = sphi 0, %s213
    %s214 = sphi 0, %s211
    %s215 = sphi 0, %s214
    %s231 = sphi 0, %s215
    %s237 = sphi 0, %s239
    %s240 = sphi 0, %s237
    %s241 = sphi 0, %s240
    %s257 = sphi 0, %s241
    %s263 = sphi 0, %s265
    %s266 = sphi 0, %s263
    %s267 = sphi 0, %s266
    %s283 = sphi 0, %s267
    %s289 = sphi 0, %s291
    %s292 = sphi 0, %s289
    %s293 = sphi 0, %s292
    %s309 = sphi 0, %s293
    %s315 = sphi 0, %s317
    %s318 = sphi 0, %s315
    %s319 = sphi 0, %s318
    %s335 = sphi 0, %s319
  $region4: #{gcn_with_glob_forward.1} parent=0 // loop_header_branch
    %20 = sbr.rel (%p18) target = $region8
  $region5: #{gcn_with_glob_forward.1} parent=0 // loop_body
    %s22 = ssub.s32 %s17, 1
    %s23 = ssub.s32 %s17, 2
    %s30 = sadd.s32 1, %s25
    %p31 = scmp.ge.s32.totalorder %s30, 1
    %s32 = scalar_select %p31, 0, %s30
    %s33 = sadd.s32 1, %s24
    %s34 = scalar_select %p31, %s33, %s24
    %p35 = scmp.ge.s32.totalorder %s34, 2
    %s36 = scalar_select %p35, 0, %s34
    %s37 = ssub.s32 %s25, %s32
    %p38 = scmp.eq.s32.totalorder %s37, 0
    %s40 = sadd.s32 %s39, 1
    %s41 = scalar_select %p38, %s39, %s40
    %p44 = pneg %p38
    %p45 = scmp.eq.s32.totalorder %s17, 1
    %p46 = por %p44, %p45
    %p47 = scmp.ne.s32.totalorder %s39, %s42
    %p48 = scmp.eq.s32.totalorder %s17, 0
    %p49 = por %p47, %p48
    %p50 = scmp.ne.s32.totalorder %s39, %s42
    %p51 = scmp.eq.s32.totalorder %s22, 1
    %p52 = por %p50, %p51
    %p53 = scmp.ne.s32.totalorder %s42, %s43
    %p54 = scmp.eq.s32.totalorder %s22, 0
    %p55 = por %p53, %p54
    %p56 = scmp.ne.s32.totalorder %s42, %s43
    %p57 = scmp.eq.s32.totalorder %s23, 1
    %p58 = por %p56, %p57
    %p60 = scmp.ne.s32.totalorder %s43, %s59
    %p61 = scmp.eq.s32.totalorder %s23, 0
    %p62 = por %p60, %p61
    %s64 = sadd.s32 %s63, 1
    %p67 = scmp.eq.s32.totalorder %s17, 1
    %p68 = scmp.ne.s32.totalorder %s63, %s65
    %p69 = scmp.eq.s32.totalorder %s17, 0
    %p70 = por %p68, %p69
    %p71 = scmp.ne.s32.totalorder %s63, %s65
    %p72 = scmp.eq.s32.totalorder %s22, 1
    %p73 = por %p71, %p72
    %p74 = scmp.ne.s32.totalorder %s65, %s66
    %p75 = scmp.eq.s32.totalorder %s22, 0
    %p76 = por %p74, %p75
    %p77 = scmp.ne.s32.totalorder %s65, %s66
    %p78 = scmp.eq.s32.totalorder %s23, 1
    %p79 = por %p77, %p78
    %p81 = scmp.ne.s32.totalorder %s66, %s80
    %p82 = scmp.eq.s32.totalorder %s23, 0
    %p83 = por %p81, %p82
    %s85 = sadd.s32 %s84, 1
    %p88 = scmp.eq.s32.totalorder %s17, 1
    %p89 = scmp.ne.s32.totalorder %s84, %s86
    %p90 = scmp.eq.s32.totalorder %s17, 0
    %p91 = por %p89, %p90
    %p92 = scmp.ne.s32.totalorder %s84, %s86
    %p93 = scmp.eq.s32.totalorder %s22, 1
    %p94 = por %p92, %p93
    %p95 = scmp.ne.s32.totalorder %s86, %s87
    %p96 = scmp.eq.s32.totalorder %s22, 0
    %p97 = por %p95, %p96
    %p98 = scmp.ne.s32.totalorder %s86, %s87
    %p99 = scmp.eq.s32.totalorder %s23, 1
    %p100 = por %p98, %p99
    %p102 = scmp.ne.s32.totalorder %s87, %s101
    %p103 = scmp.eq.s32.totalorder %s23, 0
    %p104 = por %p102, %p103
    %s105 = ssub.s32 %s24, %s36
    %p106 = scmp.eq.s32.totalorder %s105, 0
    %s108 = sadd.s32 %s107, 1
    %s109 = scalar_select %p106, %s107, %s108
    %p112 = pneg %p106
    %p113 = scmp.eq.s32.totalorder %s17, 1
    %p114 = por %p112, %p113
    %p115 = scmp.ne.s32.totalorder %s107, %s110
    %p116 = scmp.eq.s32.totalorder %s17, 0
    %p117 = por %p115, %p116
    %p118 = scmp.ne.s32.totalorder %s107, %s110
    %p119 = scmp.eq.s32.totalorder %s22, 1
    %p120 = por %p118, %p119
    %p121 = scmp.ne.s32.totalorder %s110, %s111
    %p122 = scmp.eq.s32.totalorder %s22, 0
    %p123 = por %p121, %p122
    %p124 = scmp.ne.s32.totalorder %s110, %s111
    %p125 = scmp.eq.s32.totalorder %s23, 1
    %p126 = por %p124, %p125
    %p128 = scmp.ne.s32.totalorder %s111, %s127
    %p129 = scmp.eq.s32.totalorder %s23, 0
    %p130 = por %p128, %p129
    %s131 = ssub.s32 %s24, %s36
    %p132 = scmp.eq.s32.totalorder %s131, 0
    %s134 = sadd.s32 %s133, 1
    %s135 = scalar_select %p132, %s133, %s134
    %p138 = pneg %p132
    %p139 = scmp.eq.s32.totalorder %s17, 1
    %p140 = por %p138, %p139
    %p141 = scmp.ne.s32.totalorder %s133, %s136
    %p142 = scmp.eq.s32.totalorder %s17, 0
    %p143 = por %p141, %p142
    %p144 = scmp.ne.s32.totalorder %s133, %s136
    %p145 = scmp.eq.s32.totalorder %s22, 1
    %p146 = por %p144, %p145
    %p147 = scmp.ne.s32.totalorder %s136, %s137
    %p148 = scmp.eq.s32.totalorder %s22, 0
    %p149 = por %p147, %p148
    %p150 = scmp.ne.s32.totalorder %s136, %s137
    %p151 = scmp.eq.s32.totalorder %s23, 1
    %p152 = por %p150, %p151
    %p154 = scmp.ne.s32.totalorder %s137, %s153
    %p155 = scmp.eq.s32.totalorder %s23, 0
    %p156 = por %p154, %p155
    %s157 = ssub.s32 %s24, %s36
    %p158 = scmp.eq.s32.totalorder %s157, 0
    %s160 = sadd.s32 %s159, 1
    %s161 = scalar_select %p158, %s159, %s160
    %p164 = pneg %p158
    %p165 = scmp.eq.s32.totalorder %s17, 1
    %p166 = por %p164, %p165
    %p167 = scmp.ne.s32.totalorder %s159, %s162
    %p168 = scmp.eq.s32.totalorder %s17, 0
    %p169 = por %p167, %p168
    %p170 = scmp.ne.s32.totalorder %s159, %s162
    %p171 = scmp.eq.s32.totalorder %s22, 1
    %p172 = por %p170, %p171
    %p173 = scmp.ne.s32.totalorder %s162, %s163
    %p174 = scmp.eq.s32.totalorder %s22, 0
    %p175 = por %p173, %p174
    %p176 = scmp.ne.s32.totalorder %s162, %s163
    %p177 = scmp.eq.s32.totalorder %s23, 1
    %p178 = por %p176, %p177
    %p180 = scmp.ne.s32.totalorder %s163, %s179
    %p181 = scmp.eq.s32.totalorder %s23, 0
    %p182 = por %p180, %p181
    %s183 = ssub.s32 %s24, %s36
    %p184 = scmp.eq.s32.totalorder %s183, 0
    %s186 = sadd.s32 %s185, 1
    %s187 = scalar_select %p184, %s185, %s186
    %p190 = pneg %p184
    %p191 = scmp.eq.s32.totalorder %s17, 1
    %p192 = por %p190, %p191
    %p193 = scmp.ne.s32.totalorder %s185, %s188
    %p194 = scmp.eq.s32.totalorder %s17, 0
    %p195 = por %p193, %p194
    %p196 = scmp.ne.s32.totalorder %s185, %s188
    %p197 = scmp.eq.s32.totalorder %s22, 1
    %p198 = por %p196, %p197
    %p199 = scmp.ne.s32.totalorder %s188, %s189
    %p200 = scmp.eq.s32.totalorder %s22, 0
    %p201 = por %p199, %p200
    %p202 = scmp.ne.s32.totalorder %s188, %s189
    %p203 = scmp.eq.s32.totalorder %s23, 1
    %p204 = por %p202, %p203
    %p206 = scmp.ne.s32.totalorder %s189, %s205
    %p207 = scmp.eq.s32.totalorder %s23, 0
    %p208 = por %p206, %p207
    %s209 = ssub.s32 %s24, %s36
    %p210 = scmp.eq.s32.totalorder %s209, 0
    %s212 = sadd.s32 %s211, 1
    %s213 = scalar_select %p210, %s211, %s212
    %p216 = pneg %p210
    %p217 = scmp.eq.s32.totalorder %s17, 1
    %p218 = por %p216, %p217
    %p219 = scmp.ne.s32.totalorder %s211, %s214
    %p220 = scmp.eq.s32.totalorder %s17, 0
    %p221 = por %p219, %p220
    %p222 = scmp.ne.s32.totalorder %s211, %s214
    %p223 = scmp.eq.s32.totalorder %s22, 1
    %p224 = por %p222, %p223
    %p225 = scmp.ne.s32.totalorder %s214, %s215
    %p226 = scmp.eq.s32.totalorder %s22, 0
    %p227 = por %p225, %p226
    %p228 = scmp.ne.s32.totalorder %s214, %s215
    %p229 = scmp.eq.s32.totalorder %s23, 1
    %p230 = por %p228, %p229
    %p232 = scmp.ne.s32.totalorder %s215, %s231
    %p233 = scmp.eq.s32.totalorder %s23, 0
    %p234 = por %p232, %p233
    %s235 = ssub.s32 %s24, %s36
    %p236 = scmp.eq.s32.totalorder %s235, 0
    %s238 = sadd.s32 %s237, 1
    %s239 = scalar_select %p236, %s237, %s238
    %p242 = pneg %p236
    %p243 = scmp.eq.s32.totalorder %s17, 1
    %p244 = por %p242, %p243
    %p245 = scmp.ne.s32.totalorder %s237, %s240
    %p246 = scmp.eq.s32.totalorder %s17, 0
    %p247 = por %p245, %p246
    %p248 = scmp.ne.s32.totalorder %s237, %s240
    %p249 = scmp.eq.s32.totalorder %s22, 1
    %p250 = por %p248, %p249
    %p251 = scmp.ne.s32.totalorder %s240, %s241
    %p252 = scmp.eq.s32.totalorder %s22, 0
    %p253 = por %p251, %p252
    %p254 = scmp.ne.s32.totalorder %s240, %s241
    %p255 = scmp.eq.s32.totalorder %s23, 1
    %p256 = por %p254, %p255
    %p258 = scmp.ne.s32.totalorder %s241, %s257
    %p259 = scmp.eq.s32.totalorder %s23, 0
    %p260 = por %p258, %p259
    %s261 = ssub.s32 %s24, %s36
    %p262 = scmp.eq.s32.totalorder %s261, 0
    %s264 = sadd.s32 %s263, 1
    %s265 = scalar_select %p262, %s263, %s264
    %p268 = pneg %p262
    %p269 = scmp.eq.s32.totalorder %s17, 1
    %p270 = por %p268, %p269
    %p271 = scmp.ne.s32.totalorder %s263, %s266
    %p272 = scmp.eq.s32.totalorder %s17, 0
    %p273 = por %p271, %p272
    %p274 = scmp.ne.s32.totalorder %s263, %s266
    %p275 = scmp.eq.s32.totalorder %s22, 1
    %p276 = por %p274, %p275
    %p277 = scmp.ne.s32.totalorder %s266, %s267
    %p278 = scmp.eq.s32.totalorder %s22, 0
    %p279 = por %p277, %p278
    %p280 = scmp.ne.s32.totalorder %s266, %s267
    %p281 = scmp.eq.s32.totalorder %s23, 1
    %p282 = por %p280, %p281
    %p284 = scmp.ne.s32.totalorder %s267, %s283
    %p285 = scmp.eq.s32.totalorder %s23, 0
    %p286 = por %p284, %p285
    %s287 = ssub.s32 %s24, %s36
    %p288 = scmp.eq.s32.totalorder %s287, 0
    %s290 = sadd.s32 %s289, 1
    %s291 = scalar_select %p288, %s289, %s290
    %p294 = pneg %p288
    %p295 = scmp.eq.s32.totalorder %s17, 1
    %p296 = por %p294, %p295
    %p297 = scmp.ne.s32.totalorder %s289, %s292
    %p298 = scmp.eq.s32.totalorder %s17, 0
    %p299 = por %p297, %p298
    %p300 = scmp.ne.s32.totalorder %s289, %s292
    %p301 = scmp.eq.s32.totalorder %s22, 1
    %p302 = por %p300, %p301
    %p303 = scmp.ne.s32.totalorder %s292, %s293
    %p304 = scmp.eq.s32.totalorder %s22, 0
    %p305 = por %p303, %p304
    %p306 = scmp.ne.s32.totalorder %s292, %s293
    %p307 = scmp.eq.s32.totalorder %s23, 1
    %p308 = por %p306, %p307
    %p310 = scmp.ne.s32.totalorder %s293, %s309
    %p311 = scmp.eq.s32.totalorder %s23, 0
    %p312 = por %p310, %p311
    %s313 = ssub.s32 %s25, %s32
    %p314 = scmp.eq.s32.totalorder %s313, 0
    %s316 = sadd.s32 %s315, 1
    %s317 = scalar_select %p314, %s315, %s316
    %p320 = pneg %p314
    %p321 = scmp.eq.s32.totalorder %s17, 1
    %p322 = por %p320, %p321
    %p323 = scmp.ne.s32.totalorder %s315, %s318
    %p324 = scmp.eq.s32.totalorder %s17, 0
    %p325 = por %p323, %p324
    %p326 = scmp.ne.s32.totalorder %s315, %s318
    %p327 = scmp.eq.s32.totalorder %s22, 1
    %p328 = por %p326, %p327
    %p329 = scmp.ne.s32.totalorder %s318, %s319
    %p330 = scmp.eq.s32.totalorder %s22, 0
    %p331 = por %p329, %p330
    %p332 = scmp.ne.s32.totalorder %s318, %s319
    %p333 = scmp.eq.s32.totalorder %s23, 1
    %p334 = por %p332, %p333
    %p336 = scmp.ne.s32.totalorder %s319, %s335
    %p337 = scmp.eq.s32.totalorder %s23, 0
    %p338 = por %p336, %p337
    %p339 = scmp.le.s32.totalorder 1, %s17
    %p340 = scmp.lt.s32.totalorder %s17, 3
    %p341 = pnand %p339, %p340
    %p342 = pneg %p341
    // Predicated region
    $region9: #{gcn_with_glob_forward.1} parent=5 // pred_check
      _
    $region10: #{gcn_with_glob_forward.1} parent=5 // pred_check_branch
      %344 = sbr.rel (%p341) target = $region12
    $region11: #{gcn_with_glob_forward.1} parent=5 // pred_region
      %s345 = ssub.s32 %s17, 1
      // Predicated region
      $region13: #{gcn_with_glob_forward.1} parent=11 // pred_check
        %p346 = pneg %p55
      $region14: #{gcn_with_glob_forward.1} parent=11 // pred_check_branch
        %348 = sbr.rel (%p346) target = $region16
      $region15: #{gcn_with_glob_forward.1} parent=11 // pred_region
        %s349 = smul.u32 16, %s27
        %p350 = scmp.lt.s32.totalorder %s349, 15
        %s351 = scalar_select %p350, %s349, 15
        %s352 = smul.addr %s351, 4
        %s353 = scalar_lea.vmem %s0, %s352
        %s354 = smul.u32 16, %s27
      $region16: #{gcn_with_glob_forward.1} parent=11 // pred_fallthru
        _
      // Predicated region
      $region17: #{gcn_with_glob_forward.1} parent=11 // pred_check
        %p355 = pneg %p76
      $region18: #{gcn_with_glob_forward.1} parent=11 // pred_check_branch
        %357 = sbr.rel (%p355) target = $region20
      $region19: #{gcn_with_glob_forward.1} parent=11 // pred_region
        _
      $region20: #{gcn_with_glob_forward.1} parent=11 // pred_fallthru
        _
      // Predicated region
      $region21: #{gcn_with_glob_forward.1} parent=11 // pred_check
        %p358 = pneg %p97
      $region22: #{gcn_with_glob_forward.1} parent=11 // pred_check_branch
        %360 = sbr.rel (%p358) target = $region24
      $region23: #{gcn_with_glob_forward.1} parent=11 // pred_region
        _
      $region24: #{gcn_with_glob_forward.1} parent=11 // pred_fallthru
        _
    $region12: #{gcn_with_glob_forward.1} parent=5 // pred_fallthru
      _
    %p361 = scmp.lt.s32.totalorder %s17, 2
    // Predicated region
    $region25: #{gcn_with_glob_forward.1} parent=5 // pred_check
      %p362 = pneg %p361
    $region26: #{gcn_with_glob_forward.1} parent=5 // pred_check_branch
      %364 = sbr.rel (%p362) target = $region28
    $region27: #{gcn_with_glob_forward.1} parent=5 // pred_region
      // Predicated region
      $region29: #{gcn_with_glob_forward.1} parent=27 // pred_check
        %p365 = pneg %p117
      $region30: #{gcn_with_glob_forward.1} parent=27 // pred_check_branch
        %367 = sbr.rel (%p365) target = $region32
      $region31: #{gcn_with_glob_forward.1} parent=27 // pred_region
        %p368 = scmp.lt.s32.totalorder %s24, 1
        %s369 = scalar_select %p368, %s24, 1
        %s370 = smul.addr %s369, 16
        %s371 = smul.addr %s370, 8
        %s372 = scalar_lea.vmem %s3, %s371
      $region32: #{gcn_with_glob_forward.1} parent=27 // pred_fallthru
        _
      // Predicated region
      $region33: #{gcn_with_glob_forward.1} parent=27 // pred_check
        %p373 = pneg %p143
      $region34: #{gcn_with_glob_forward.1} parent=27 // pred_check_branch
        %375 = sbr.rel (%p373) target = $region36
      $region35: #{gcn_with_glob_forward.1} parent=27 // pred_region
        %p376 = scmp.lt.s32.totalorder %s24, 1
        %s377 = scalar_select %p376, %s24, 1
        %s378 = scalar_lea.vmem %s4, %s377
      $region36: #{gcn_with_glob_forward.1} parent=27 // pred_fallthru
        _
      // Predicated region
      $region37: #{gcn_with_glob_forward.1} parent=27 // pred_check
        %p379 = pneg %p169
      $region38: #{gcn_with_glob_forward.1} parent=27 // pred_check_branch
        %381 = sbr.rel (%p379) target = $region40
      $region39: #{gcn_with_glob_forward.1} parent=27 // pred_region
        %p382 = scmp.lt.s32.totalorder %s24, 1
        %s383 = scalar_select %p382, %s24, 1
        %s384 = smul.addr %s383, 16
        %s385 = smul.addr %s384, 8
        %s386 = scalar_lea.vmem %s5, %s385
      $region40: #{gcn_with_glob_forward.1} parent=27 // pred_fallthru
        _
      // Predicated region
      $region41: #{gcn_with_glob_forward.1} parent=27 // pred_check
        %p387 = pneg %p195
      $region42: #{gcn_with_glob_forward.1} parent=27 // pred_check_branch
        %389 = sbr.rel (%p387) target = $region44
      $region43: #{gcn_with_glob_forward.1} parent=27 // pred_region
        %p390 = scmp.lt.s32.totalorder %s24, 1
        %s391 = scalar_select %p390, %s24, 1
        %s392 = scalar_lea.vmem %s6, %s391
      $region44: #{gcn_with_glob_forward.1} parent=27 // pred_fallthru
        _
      // Predicated region
      $region45: #{gcn_with_glob_forward.1} parent=27 // pred_check
        %p393 = pneg %p221
      $region46: #{gcn_with_glob_forward.1} parent=27 // pred_check_branch
        %395 = sbr.rel (%p393) target = $region48
      $region47: #{gcn_with_glob_forward.1} parent=27 // pred_region
        %p396 = scmp.lt.s32.totalorder %s24, 1
        %s397 = scalar_select %p396, %s24, 1
        %s398 = smul.addr %s397, 16
        %s399 = smul.addr %s398, 8
        %s400 = scalar_lea.vmem %s7, %s399
      $region48: #{gcn_with_glob_forward.1} parent=27 // pred_fallthru
        _
      // Predicated region
      $region49: #{gcn_with_glob_forward.1} parent=27 // pred_check
        %p401 = pneg %p247
      $region50: #{gcn_with_glob_forward.1} parent=27 // pred_check_branch
        %403 = sbr.rel (%p401) target = $region52
      $region51: #{gcn_with_glob_forward.1} parent=27 // pred_region
        %p404 = scmp.lt.s32.totalorder %s24, 1
        %s405 = scalar_select %p404, %s24, 1
        %s406 = scalar_lea.vmem %s8, %s405
      $region52: #{gcn_with_glob_forward.1} parent=27 // pred_fallthru
        _
      // Predicated region
      $region53: #{gcn_with_glob_forward.1} parent=27 // pred_check
        %p407 = pneg %p273
      $region54: #{gcn_with_glob_forward.1} parent=27 // pred_check_branch
        %409 = sbr.rel (%p407) target = $region56
      $region55: #{gcn_with_glob_forward.1} parent=27 // pred_region
        %p410 = scmp.lt.s32.totalorder %s24, 1
        %s411 = scalar_select %p410, %s24, 1
        %s412 = smul.addr %s411, 16
        %s413 = smul.addr %s412, 8
        %s414 = scalar_lea.vmem %s9, %s413
      $region56: #{gcn_with_glob_forward.1} parent=27 // pred_fallthru
        _
      // Predicated region
      $region57: #{gcn_with_glob_forward.1} parent=27 // pred_check
        %p415 = pneg %p299
      $region58: #{gcn_with_glob_forward.1} parent=27 // pred_check_branch
        %417 = sbr.rel (%p415) target = $region60
      $region59: #{gcn_with_glob_forward.1} parent=27 // pred_region
        %p418 = scmp.lt.s32.totalorder %s24, 1
        %s419 = scalar_select %p418, %s24, 1
        %s420 = scalar_lea.vmem %s10, %s419
      $region60: #{gcn_with_glob_forward.1} parent=27 // pred_fallthru
        _
    $region28: #{gcn_with_glob_forward.1} parent=5 // pred_fallthru
      _
    %p421 = scmp.le.s32.totalorder 1, %s17
    %p422 = scmp.lt.s32.totalorder %s17, 3
    %p423 = pnand %p421, %p422
    %p424 = pneg %p423
    // Predicated region
    $region61: #{gcn_with_glob_forward.1} parent=5 // pred_check
      _
    $region62: #{gcn_with_glob_forward.1} parent=5 // pred_check_branch
      %426 = sbr.rel (%p423) target = $region64
    $region63: #{gcn_with_glob_forward.1} parent=5 // pred_region
      %s427 = ssub.s32 %s17, 1
      %s428 = smul.u32 16, %s27
      %p429 = scmp.lt.s32.totalorder %s428, 15
      %s430 = scalar_select %p429, %s428, 15
      %s431 = smul.addr %s430, 4
      %s432 = scalar_lea.vmem %s0, %s431
      %p433 = pneg %p55
      %p434 = pneg %p52
      %p435 = pneg %p76
      %p436 = pneg %p73
      %p437 = pneg %p97
      %p438 = pneg %p94
      %p439 = scmp.lt.s32.totalorder %s26, 1
      %s440 = scalar_select %p439, %s26, 1
      %s441 = smul.addr %s440, 16
      %s442 = smul.addr %s441, 8
      %s443 = scalar_lea.vmem %s3, %s442
      %p444 = pneg %p123
      %p445 = pneg %p120
      %p446 = scmp.lt.s32.totalorder %s26, 1
      %s447 = scalar_select %p446, %s26, 1
      %s448 = scalar_lea.vmem %s4, %s447
      %p449 = pneg %p149
      %p450 = pneg %p146
      %p451 = scmp.lt.s32.totalorder %s26, 1
      %s452 = scalar_select %p451, %s26, 1
      %s453 = smul.addr %s452, 16
      %s454 = smul.addr %s453, 8
      %s455 = scalar_lea.vmem %s5, %s454
      %p456 = pneg %p175
      %p457 = pneg %p172
      %p458 = scmp.lt.s32.totalorder %s26, 1
      %s459 = scalar_select %p458, %s26, 1
      %s460 = scalar_lea.vmem %s6, %s459
      %p461 = pneg %p201
      %p462 = pneg %p198
      %p463 = scmp.lt.s32.totalorder %s26, 1
      %s464 = scalar_select %p463, %s26, 1
      %s465 = smul.addr %s464, 16
      %s466 = smul.addr %s465, 8
      %s467 = scalar_lea.vmem %s7, %s466
      %p468 = pneg %p227
      %p469 = pneg %p224
      %p470 = scmp.lt.s32.totalorder %s26, 1
      %s471 = scalar_select %p470, %s26, 1
      %s472 = scalar_lea.vmem %s8, %s471
      %p473 = pneg %p253
      %p474 = pneg %p250
      %p475 = scmp.lt.s32.totalorder %s26, 1
      %s476 = scalar_select %p475, %s26, 1
      %s477 = smul.addr %s476, 16
      %s478 = smul.addr %s477, 8
      %s479 = scalar_lea.vmem %s9, %s478
      %p480 = pneg %p279
      %p481 = pneg %p276
      %p482 = scmp.lt.s32.totalorder %s26, 1
      %s483 = scalar_select %p482, %s26, 1
      %s484 = scalar_lea.vmem %s10, %s483
      %p485 = pneg %p305
      %p486 = pneg %p302
      %p487 = pneg %p331
      %p488 = pneg %p328
      %s489 = smul.u32 16, %s27
      %p490 = scmp.lt.s32.totalorder %s489, 15
      %s491 = scalar_select %p490, %s489, 15
      %s492 = smul.addr %s491, 8
      %s493 = scalar_lea.vmem %s11, %s492
      %s494 = smul.u32 16, %s27
      %p495 = scmp.lt.s32.totalorder %s494, 15
      %s496 = scalar_select %p495, %s494, 15
      %s497 = smul.addr %s496, 4
      %s498 = scalar_lea.vmem %s0, %s497
      %s499 = smul.u32 16, %s27
      %p500 = scmp.lt.s32.totalorder %s26, 1
      %s501 = scalar_select %p500, %s26, 1
      %s502 = smul.addr %s501, 16
      %s503 = smul.addr %s502, 8
      %s504 = scalar_lea.vmem %s3, %s503
      %p505 = scmp.lt.s32.totalorder %s26, 1
      %s506 = scalar_select %p505, %s26, 1
      %s507 = scalar_lea.vmem %s4, %s506
      %p508 = scmp.lt.s32.totalorder %s26, 1
      %s509 = scalar_select %p508, %s26, 1
      %s510 = smul.addr %s509, 16
      %s511 = smul.addr %s510, 8
      %s512 = scalar_lea.vmem %s5, %s511
      %p513 = scmp.lt.s32.totalorder %s26, 1
      %s514 = scalar_select %p513, %s26, 1
      %s515 = scalar_lea.vmem %s6, %s514
      %p516 = scmp.lt.s32.totalorder %s26, 1
      %s517 = scalar_select %p516, %s26, 1
      %s518 = smul.addr %s517, 16
      %s519 = smul.addr %s518, 8
      %s520 = scalar_lea.vmem %s7, %s519
      %p521 = scmp.lt.s32.totalorder %s26, 1
      %s522 = scalar_select %p521, %s26, 1
      %s523 = scalar_lea.vmem %s8, %s522
      %p524 = scmp.lt.s32.totalorder %s26, 1
      %s525 = scalar_select %p524, %s26, 1
      %s526 = smul.addr %s525, 16
      %s527 = smul.addr %s526, 8
      %s528 = scalar_lea.vmem %s9, %s527
      %p529 = scmp.lt.s32.totalorder %s26, 1
      %s530 = scalar_select %p529, %s26, 1
      %s531 = scalar_lea.vmem %s10, %s530
      %s532 = smul.u32 16, %s27
      %p533 = scmp.lt.s32.totalorder %s532, 15
      %s534 = scalar_select %p533, %s532, 15
      %s535 = smul.addr %s534, 8
      %s536 = scalar_lea.vmem %s11, %s535
      %s537 = smul.u32 16, %s27
      %p539 = scmp.lt.s32.totalorder %s26, 0
      %s540 = ssub.s32 0, %s26
      %s541 = scalar_select %p539, %s540, %s26
      %s542 = sand.u32 %s541, 1
      %s543 = ssub.s32 0, %s542
      %s544 = scalar_select %p539, %s543, %s542
      %p545 = scmp.ne.s32.totalorder %s544, 0
      %p546 = scmp.lt.s32.totalorder %s544, 0
      %p547 = pnand %p546, %p545
      %p548 = pneg %p547
      %s549 = sadd.s32 %s544, 2
      %s550 = scalar_select %p548, %s549, %s544
      %s551 = ssub.s32 1, %s550
      %p552 = scmp.eq.s32.totalorder %s26, 0
      %p553 = scmp.eq.s32.totalorder %s27, 0
      %p554 = pnand %p552, %p553
      %p555 = pneg %p554
      // Predicated region
      $region65: #{gcn_with_glob_forward.1} parent=63 // pred_check
        _
      $region66: #{gcn_with_glob_forward.1} parent=63 // pred_check_branch
        %557 = sbr.rel (%p554) target = $region68
      $region67: #{gcn_with_glob_forward.1} parent=63 // pred_region
        %v558 = vld [vmem:[%s1] sm:$0xf]
        %v559 = vld [vmem:[%s1 + $0x4] sm:$0xf]
        %v560 = vld [vmem:[%s1 + $0x8] sm:$0xf]
        %v561 = vld [vmem:[%s1 + $0xc] sm:$0xf]
        %v562 = vld [vmem:[%s1 + $0x10] sm:$0xf]
        %v563 = vld [vmem:[%s1 + $0x14] sm:$0xf]
        %v564 = vld [vmem:[%s1 + $0x18] sm:$0xf]
        %v565 = vld [vmem:[%s1 + $0x1c] sm:$0xf]
        %v566 = vld [vmem:[%s1 + $0x20] sm:$0xf]
        %v567 = vld [vmem:[%s1 + $0x24] sm:$0xf]
        %v568 = vld [vmem:[%s1 + $0x28] sm:$0xf]
        %v569 = vld [vmem:[%s1 + $0x2c] sm:$0xf]
        %v570 = vld [vmem:[%s1 + $0x30] sm:$0xf]
        %v571 = vld [vmem:[%s1 + $0x34] sm:$0xf]
        %v572 = vld [vmem:[%s1 + $0x38] sm:$0xf]
        %v573 = vld [vmem:[%s1 + $0x3c] sm:$0xf]
        %v590 = vunpack.c.l.b16 %v558
        %v591 = vunpack.c.l.b16 %v559
        %v592 = vunpack.c.l.b16 %v560
        %v593 = vunpack.c.l.b16 %v561
        %v594 = vunpack.c.l.b16 %v562
        %v595 = vunpack.c.l.b16 %v563
        %v596 = vunpack.c.l.b16 %v564
        %v597 = vunpack.c.l.b16 %v565
        %v598 = vunpack.c.l.b16 %v566
        %v599 = vunpack.c.l.b16 %v567
        %v600 = vunpack.c.l.b16 %v568
        %v601 = vunpack.c.l.b16 %v569
        %v602 = vunpack.c.l.b16 %v570
        %v603 = vunpack.c.l.b16 %v571
        %v604 = vunpack.c.l.b16 %v572
        %v605 = vunpack.c.l.b16 %v573
        %v606 = vpack.c.b16 %v591, %v590
        %v607 = vpack.c.b16 %v593, %v592
        %v608 = vpack.c.b16 %v595, %v594
        %v609 = vpack.c.b16 %v597, %v596
        %v610 = vpack.c.b16 %v599, %v598
        %v611 = vpack.c.b16 %v601, %v600
        %v612 = vpack.c.b16 %v603, %v602
        %v613 = vpack.c.b16 %v605, %v604
        %622 = vst [vmem:[#allocation2] sm:$0xff] %v606
        %623 = vst [vmem:[#allocation2 + $0x8] sm:$0xff] %v607
        %624 = vst [vmem:[#allocation2 + $0x10] sm:$0xff] %v608
        %625 = vst [vmem:[#allocation2 + $0x18] sm:$0xff] %v609
        %626 = vst [vmem:[#allocation2 + $0x20] sm:$0xff] %v610
        %627 = vst [vmem:[#allocation2 + $0x28] sm:$0xff] %v611
        %628 = vst [vmem:[#allocation2 + $0x30] sm:$0xff] %v612
        %629 = vst [vmem:[#allocation2 + $0x38] sm:$0xff] %v613
        %v630 = vld [vmem:[%s2] sm:$0x1]
        %631 = vst [vmem:[#allocation4] sm:$0x1] %v630
      $region68: #{gcn_with_glob_forward.1} parent=63 // pred_fallthru
        _
      %p632 = scmp.gt.s32.totalorder %s26, 0
      %p633 = pnand %p553, %p632
      %p634 = pneg %p633
      // Predicated region
      $region69: #{gcn_with_glob_forward.1} parent=63 // pred_check
        _
      $region70: #{gcn_with_glob_forward.1} parent=63 // pred_check_branch
        %636 = sbr.rel (%p633) target = $region72
      $region71: #{gcn_with_glob_forward.1} parent=63 // pred_region
        %v637 = vld [vmem:[%s507] sm:$0x1]
        %v638 = vld [vmem:[#allocation4] sm:$0x1]
        %v639 = vld [vmem:[%s512] sm:$0xff]
        %v640 = vld [vmem:[%s512 + $0x8] sm:$0xff]
        %v641 = vld [vmem:[%s512 + $0x10] sm:$0xff]
        %v642 = vld [vmem:[%s512 + $0x18] sm:$0xff]
        %v643 = vld [vmem:[%s512 + $0x20] sm:$0xff]
        %v644 = vld [vmem:[%s512 + $0x28] sm:$0xff]
        %v645 = vld [vmem:[%s512 + $0x30] sm:$0xff]
        %v646 = vld [vmem:[%s512 + $0x38] sm:$0xff]
        %v647 = vld [vmem:[%s512 + $0x40] sm:$0xff]
        %v648 = vld [vmem:[%s512 + $0x48] sm:$0xff]
        %v649 = vld [vmem:[%s512 + $0x50] sm:$0xff]
        %v650 = vld [vmem:[%s512 + $0x58] sm:$0xff]
        %v651 = vld [vmem:[%s512 + $0x60] sm:$0xff]
        %v652 = vld [vmem:[%s512 + $0x68] sm:$0xff]
        %v653 = vld [vmem:[%s512 + $0x70] sm:$0xff]
        %v654 = vld [vmem:[%s512 + $0x78] sm:$0xff]
        %655 = vmatprep.subr.mxu0 0.0
        %656 = vmatpush1.msra.mxu0 %v639
        %657 = vmatprep.subr.mxu0 0.0
        %658 = vmatpush1.msra.mxu0 %v640
        %659 = vmatprep.subr.mxu0 0.0
        %660 = vmatpush1.msra.mxu0 %v641
        %661 = vmatprep.subr.mxu0 0.0
        %662 = vmatpush1.msra.mxu0 %v642
        %663 = vmatprep.subr.mxu0 0.0
        %664 = vmatpush1.msra.mxu0 %v643
        %665 = vmatprep.subr.mxu0 0.0
        %666 = vmatpush1.msra.mxu0 %v644
        %667 = vmatprep.subr.mxu0 0.0
        %668 = vmatpush1.msra.mxu0 %v645
        %669 = vmatprep.subr.mxu0 0.0
        %670 = vmatpush1.msra.mxu0 %v646
        %671 = vmatprep.subr.mxu0 0.0
        %672 = vmatpush1.msra.mxu0 %v647
        %673 = vmatprep.subr.mxu0 0.0
        %674 = vmatpush1.msra.mxu0 %v648
        %675 = vmatprep.subr.mxu0 0.0
        %676 = vmatpush1.msra.mxu0 %v649
        %677 = vmatprep.subr.mxu0 0.0
        %678 = vmatpush1.msra.mxu0 %v650
        %679 = vmatprep.subr.mxu0 0.0
        %680 = vmatpush1.msra.mxu0 %v651
        %681 = vmatprep.subr.mxu0 0.0
        %682 = vmatpush1.msra.mxu0 %v652
        %683 = vmatprep.subr.mxu0 0.0
        %684 = vmatpush1.msra.mxu0 %v653
        %685 = vmatprep.subr.mxu0 0.0
        %686 = vmatpush1.msra.mxu0 %v654
        %687 = vmatprep.subr.mxu0 0.0
        %688 = vmatpush1.msra.mxu0 0.0
        %689 = vmatprep.subr.mxu0 0.0
        %690 = vmatpush1.msra.mxu0 0.0
        %691 = vmatprep.subr.mxu0 0.0
        %692 = vmatpush1.msra.mxu0 0.0
        %693 = vmatprep.subr.mxu0 0.0
        %694 = vmatpush1.msra.mxu0 0.0
        %695 = vmatprep.subr.mxu0 0.0
        %696 = vmatpush1.msra.mxu0 0.0
        %697 = vmatprep.subr.mxu0 0.0
        %698 = vmatpush1.msra.mxu0 0.0
        %699 = vmatprep.subr.mxu0 0.0
        %700 = vmatpush1.msra.mxu0 0.0
        %701 = vmatprep.subr.mxu0 0.0
        %702 = vmatpush1.msra.mxu0 0.0
        %703 = vmatprep.subr.mxu0 0.0
        %704 = vmatpush1.msra.mxu0 0.0
        %705 = vmatprep.subr.mxu0 0.0
        %706 = vmatpush1.msra.mxu0 0.0
        %707 = vmatprep.subr.mxu0 0.0
        %708 = vmatpush1.msra.mxu0 0.0
        %709 = vmatprep.subr.mxu0 0.0
        %710 = vmatpush1.msra.mxu0 0.0
        %711 = vmatprep.subr.mxu0 0.0
        %712 = vmatpush1.msra.mxu0 0.0
        %713 = vmatprep.subr.mxu0 0.0
        %714 = vmatpush1.msra.mxu0 0.0
        %715 = vmatprep.subr.mxu0 0.0
        %716 = vmatpush1.msra.mxu0 0.0
        %717 = vmatprep.subr.mxu0 0.0
        %718 = vmatpush1.msra.mxu0 0.0
        %719 = vmatprep.mubr.f32.mxu0 0.0
        %720 = vmatmul.mubr.f32.gmra.mrb[0].mxu0 %v638
        %v721 = vpop.f32.mrb[0].mxu0
        %v722 = vadd.f32 0.0, %v721
        %v723 = vpop.f32.mrb[0].mxu0
        %724 = vdwg.mxu0
        %v725 = vadd.f32 %v637, %v722
        %v726 = vld [vmem:[%s515] sm:$0x1]
        %v727 = vadd.f32 %v725, %v726
        %s728 = smul.u32 %s550, 8
        %s729 = smul.addr %s728, 8
        %s730 = scalar_lea.vmem [#allocation2], %s729
        %v731 = vld [vmem:[%s730] sm:$0xff]
        %v732 = vld [vmem:[%s730 + $0x8] sm:$0xff]
        %v733 = vld [vmem:[%s730 + $0x10] sm:$0xff]
        %v734 = vld [vmem:[%s730 + $0x18] sm:$0xff]
        %v735 = vld [vmem:[%s730 + $0x20] sm:$0xff]
        %v736 = vld [vmem:[%s730 + $0x28] sm:$0xff]
        %v737 = vld [vmem:[%s730 + $0x30] sm:$0xff]
        %v738 = vld [vmem:[%s730 + $0x38] sm:$0xff]
        %v739 = vunpack.c.l.bf16 %v731
        %v740 = vunpack.c.h.bf16 %v731
        %v741 = vunpack.c.l.bf16 %v732
        %v742 = vunpack.c.h.bf16 %v732
        %v743 = vunpack.c.l.bf16 %v733
        %v744 = vunpack.c.h.bf16 %v733
        %v745 = vunpack.c.l.bf16 %v734
        %v746 = vunpack.c.h.bf16 %v734
        %v747 = vunpack.c.l.bf16 %v735
        %v748 = vunpack.c.h.bf16 %v735
        %v749 = vunpack.c.l.bf16 %v736
        %v750 = vunpack.c.h.bf16 %v736
        %v751 = vunpack.c.l.bf16 %v737
        %v752 = vunpack.c.h.bf16 %v737
        %v753 = vunpack.c.l.bf16 %v738
        %v754 = vunpack.c.h.bf16 %v738
        %v756 = vlaneseq
        %v757 = vshrl.u32 %v756, 7
        %v758 = vsub.s32 0, %v757
        %v759 = vrot.slane %v727, %v758
        %v761 = vadd.f32 %v739, %v759
        %v762 = vadd.f32 %v740, %v759
        %v763 = vadd.f32 %v741, %v759
        %v764 = vadd.f32 %v742, %v759
        %v765 = vadd.f32 %v743, %v759
        %v766 = vadd.f32 %v744, %v759
        %v767 = vadd.f32 %v745, %v759
        %v768 = vadd.f32 %v746, %v759
        %v769 = vadd.f32 %v747, %v759
        %v770 = vadd.f32 %v748, %v759
        %v771 = vadd.f32 %v749, %v759
        %v772 = vadd.f32 %v750, %v759
        %v773 = vadd.f32 %v751, %v759
        %v774 = vadd.f32 %v752, %v759
        %v775 = vadd.f32 %v753, %v759
        %v776 = vadd.f32 %v754, %v759
        %v777 = vpack.c.bf16 %v762, %v761
        %v778 = vpack.c.bf16 %v764, %v763
        %v779 = vpack.c.bf16 %v766, %v765
        %v780 = vpack.c.bf16 %v768, %v767
        %v781 = vpack.c.bf16 %v770, %v769
        %v782 = vpack.c.bf16 %v772, %v771
        %v783 = vpack.c.bf16 %v774, %v773
        %v784 = vpack.c.bf16 %v776, %v775
        %785 = vst [vmem:[%s730] sm:$0xff] %v777
        %786 = vst [vmem:[%s730 + $0x8] sm:$0xff] %v778
        %787 = vst [vmem:[%s730 + $0x10] sm:$0xff] %v779
        %788 = vst [vmem:[%s730 + $0x18] sm:$0xff] %v780
        %789 = vst [vmem:[%s730 + $0x20] sm:$0xff] %v781
        %790 = vst [vmem:[%s730 + $0x28] sm:$0xff] %v782
        %791 = vst [vmem:[%s730 + $0x30] sm:$0xff] %v783
        %792 = vst [vmem:[%s730 + $0x38] sm:$0xff] %v784
      $region72: #{gcn_with_glob_forward.1} parent=63 // pred_fallthru
        _
      %p793 = scmp.lt.s32.totalorder %s26, 1
      %p794 = pnand %p553, %p793
      %p795 = pneg %p794
      // Predicated region
      $region73: #{gcn_with_glob_forward.1} parent=63 // pred_check
        _
      $region74: #{gcn_with_glob_forward.1} parent=63 // pred_check_branch
        %797 = sbr.rel (%p794) target = $region76
      $region75: #{gcn_with_glob_forward.1} parent=63 // pred_region
        %798 = vst [vmem:[#allocation3] sm:$0x1] -inf
      $region76: #{gcn_with_glob_forward.1} parent=63 // pred_fallthru
        _
      %v799 = vld [vmem:[%s498] sm:$0xf]
      %v800 = vld [vmem:[%s498 + $0x4] sm:$0xf]
      %v801 = vld [vmem:[%s498 + $0x8] sm:$0xf]
      %v802 = vld [vmem:[%s498 + $0xc] sm:$0xf]
      %v803 = vld [vmem:[%s498 + $0x10] sm:$0xf]
      %v804 = vld [vmem:[%s498 + $0x14] sm:$0xf]
      %v805 = vld [vmem:[%s498 + $0x18] sm:$0xf]
      %v806 = vld [vmem:[%s498 + $0x1c] sm:$0xf]
      %v807 = vld [vmem:[%s498 + $0x20] sm:$0xf]
      %v808 = vld [vmem:[%s498 + $0x24] sm:$0xf]
      %v809 = vld [vmem:[%s498 + $0x28] sm:$0xf]
      %v810 = vld [vmem:[%s498 + $0x2c] sm:$0xf]
      %v811 = vld [vmem:[%s498 + $0x30] sm:$0xf]
      %v812 = vld [vmem:[%s498 + $0x34] sm:$0xf]
      %v813 = vld [vmem:[%s498 + $0x38] sm:$0xf]
      %v814 = vld [vmem:[%s498 + $0x3c] sm:$0xf]
      %s815 = smul.u32 %s550, 8
      %s816 = smul.addr %s815, 8
      %s817 = scalar_lea.vmem [#allocation2], %s816
      %v818 = vld [vmem:[%s817] sm:$0xff]
      %v819 = vld [vmem:[%s817 + $0x8] sm:$0xff]
      %v820 = vld [vmem:[%s817 + $0x10] sm:$0xff]
      %v821 = vld [vmem:[%s817 + $0x18] sm:$0xff]
      %v822 = vld [vmem:[%s817 + $0x20] sm:$0xff]
      %v823 = vld [vmem:[%s817 + $0x28] sm:$0xff]
      %v824 = vld [vmem:[%s817 + $0x30] sm:$0xff]
      %v825 = vld [vmem:[%s817 + $0x38] sm:$0xff]
      %v842 = vunpack.c.l.b16 %v799
      %v843 = vunpack.c.l.b16 %v800
      %v844 = vunpack.c.l.b16 %v801
      %v845 = vunpack.c.l.b16 %v802
      %v846 = vunpack.c.l.b16 %v803
      %v847 = vunpack.c.l.b16 %v804
      %v848 = vunpack.c.l.b16 %v805
      %v849 = vunpack.c.l.b16 %v806
      %v850 = vunpack.c.l.b16 %v807
      %v851 = vunpack.c.l.b16 %v808
      %v852 = vunpack.c.l.b16 %v809
      %v853 = vunpack.c.l.b16 %v810
      %v854 = vunpack.c.l.b16 %v811
      %v855 = vunpack.c.l.b16 %v812
      %v856 = vunpack.c.l.b16 %v813
      %v857 = vunpack.c.l.b16 %v814
      %v858 = vpack.c.b16 %v843, %v842
      %v859 = vpack.c.b16 %v845, %v844
      %v860 = vpack.c.b16 %v847, %v846
      %v861 = vpack.c.b16 %v849, %v848
      %v862 = vpack.c.b16 %v851, %v850
      %v863 = vpack.c.b16 %v853, %v852
      %v864 = vpack.c.b16 %v855, %v854
      %v865 = vpack.c.b16 %v857, %v856
      %874 = vmatprep.subr.bf16.mxu0 0
      %875 = vmatpush1.bf16.msra.mxu0 %v818
      %876 = vmatprep.subr.bf16.mxu0 0
      %877 = vmatpush1.bf16.msra.mxu0 %v819
      %878 = vmatprep.subr.bf16.mxu0 0
      %879 = vmatpush1.bf16.msra.mxu0 %v820
      %880 = vmatprep.subr.bf16.mxu0 0
      %881 = vmatpush1.bf16.msra.mxu0 %v821
      %882 = vmatprep.subr.bf16.mxu0 0
      %883 = vmatpush1.bf16.msra.mxu0 %v822
      %884 = vmatprep.subr.bf16.mxu0 0
      %885 = vmatpush1.bf16.msra.mxu0 %v823
      %886 = vmatprep.subr.bf16.mxu0 0
      %887 = vmatpush1.bf16.msra.mxu0 %v824
      %888 = vmatprep.subr.bf16.mxu0 0
      %889 = vmatpush1.bf16.msra.mxu0 %v825
      %890 = vmatprep.subr.bf16.mxu0 0
      %891 = vmatpush1.bf16.msra.mxu0 0
      %892 = vmatprep.subr.bf16.mxu0 0
      %893 = vmatpush1.bf16.msra.mxu0 0
      %894 = vmatprep.subr.bf16.mxu0 0
      %895 = vmatpush1.bf16.msra.mxu0 0
      %896 = vmatprep.subr.bf16.mxu0 0
      %897 = vmatpush1.bf16.msra.mxu0 0
      %898 = vmatprep.subr.bf16.mxu0 0
      %899 = vmatpush1.bf16.msra.mxu0 0
      %900 = vmatprep.subr.bf16.mxu0 0
      %901 = vmatpush1.bf16.msra.mxu0 0
      %902 = vmatprep.subr.bf16.mxu0 0
      %903 = vmatpush1.bf16.msra.mxu0 0
      %904 = vmatprep.subr.bf16.mxu0 0
      %905 = vmatpush1.bf16.msra.mxu0 0
      %906 = vmatprep.mubr.bf16.mxu0 0
      %907 = vmatmul.mubr.bf16.gmra.mrb[0].mxu0 %v858
      %v908 = vpop.f32.mrb[0].mxu0
      %v909 = vadd.f32 0.0, %v908
      %v910 = vpop.f32.mrb[0].mxu0
      %v911 = vpop.f32.mrb[0].mxu0
      %v912 = vadd.f32 0.0, %v911
      %v913 = vpop.f32.mrb[0].mxu0
      %914 = vmatprep.mubr.bf16.mxu0 0
      %915 = vmatmul.mubr.bf16.gmra.mrb[0].mxu0 %v859
      %v916 = vpop.f32.mrb[0].mxu0
      %v917 = vadd.f32 0.0, %v916
      %v918 = vpop.f32.mrb[0].mxu0
      %v919 = vpop.f32.mrb[0].mxu0
      %v920 = vadd.f32 0.0, %v919
      %v921 = vpop.f32.mrb[0].mxu0
      %922 = vmatprep.mubr.bf16.mxu0 0
      %923 = vmatmul.mubr.bf16.gmra.mrb[0].mxu0 %v860
      %v924 = vpop.f32.mrb[0].mxu0
      %v925 = vadd.f32 0.0, %v924
      %v926 = vpop.f32.mrb[0].mxu0
      %v927 = vpop.f32.mrb[0].mxu0
      %v928 = vadd.f32 0.0, %v927
      %v929 = vpop.f32.mrb[0].mxu0
      %930 = vmatprep.mubr.bf16.mxu0 0
      %931 = vmatmul.mubr.bf16.gmra.mrb[0].mxu0 %v861
      %v932 = vpop.f32.mrb[0].mxu0
      %v933 = vadd.f32 0.0, %v932
      %v934 = vpop.f32.mrb[0].mxu0
      %v935 = vpop.f32.mrb[0].mxu0
      %v936 = vadd.f32 0.0, %v935
      %v937 = vpop.f32.mrb[0].mxu0
      %938 = vmatprep.mubr.bf16.mxu0 0
      %939 = vmatmul.mubr.bf16.gmra.mrb[0].mxu0 %v862
      %v940 = vpop.f32.mrb[0].mxu0
      %v941 = vadd.f32 0.0, %v940
      %v942 = vpop.f32.mrb[0].mxu0
      %v943 = vpop.f32.mrb[0].mxu0
      %v944 = vadd.f32 0.0, %v943
      %v945 = vpop.f32.mrb[0].mxu0
      %946 = vmatprep.mubr.bf16.mxu0 0
      %947 = vmatmul.mubr.bf16.gmra.mrb[0].mxu0 %v863
      %v948 = vpop.f32.mrb[0].mxu0
      %v949 = vadd.f32 0.0, %v948
      %v950 = vpop.f32.mrb[0].mxu0
      %v951 = vpop.f32.mrb[0].mxu0
      %v952 = vadd.f32 0.0, %v951
      %v953 = vpop.f32.mrb[0].mxu0
      %954 = vmatprep.mubr.bf16.mxu0 0
      %955 = vmatmul.mubr.bf16.gmra.mrb[0].mxu0 %v864
      %v956 = vpop.f32.mrb[0].mxu0
      %v957 = vadd.f32 0.0, %v956
      %v958 = vpop.f32.mrb[0].mxu0
      %v959 = vpop.f32.mrb[0].mxu0
      %v960 = vadd.f32 0.0, %v959
      %v961 = vpop.f32.mrb[0].mxu0
      %962 = vmatprep.mubr.bf16.mxu0 0
      %963 = vmatmul.mubr.bf16.gmra.mrb[0].mxu0 %v865
      %v964 = vpop.f32.mrb[0].mxu0
      %v965 = vadd.f32 0.0, %v964
      %v966 = vpop.f32.mrb[0].mxu0
      %v967 = vpop.f32.mrb[0].mxu0
      %v968 = vadd.f32 0.0, %v967
      %v969 = vpop.f32.mrb[0].mxu0
      %970 = vdwg.mxu0
      %s971 = smul.u32 %s27, 128
      // Predicated region
      $region77: #{gcn_with_glob_forward.1} parent=63 // pred_check
        %p972 = pneg %p793
      $region78: #{gcn_with_glob_forward.1} parent=63 // pred_check_branch
        %974 = sbr.rel (%p972) target = $region80
      $region79: #{gcn_with_glob_forward.1} parent=63 // pred_region
        %p975 = scmp.lt.s32.totalorder %s27, 0
        // Predicated region
        $region81: #{gcn_with_glob_forward.1} parent=79 // pred_check
          %p976 = pneg %p975
        $region82: #{gcn_with_glob_forward.1} parent=79 // pred_check_branch
          %978 = sbr.rel (%p976) target = $region84
        $region83: #{gcn_with_glob_forward.1} parent=79 // pred_region
          %v979 = vld [vmem:[#allocation3] sm:$0x1]
          %v980 = vmax.f32 %v909, %v925
          %v981 = vmax.f32 %v912, %v928
          %v982 = vmax.f32 %v917, %v933
          %v983 = vmax.f32 %v920, %v936
          %v984 = vmax.f32 %v980, %v941
          %v985 = vmax.f32 %v981, %v944
          %v986 = vmax.f32 %v982, %v949
          %v987 = vmax.f32 %v983, %v952
          %v988 = vmax.f32 %v984, %v957
          %v989 = vmax.f32 %v985, %v960
          %v990 = vmax.f32 %v986, %v965
          %v991 = vmax.f32 %v987, %v968
          %v992 = vmax.f32 %v988, %v989
          %v993 = vmax.f32 %v990, %v991
          %v994 = vmax.f32 %v992, %v993
          %v995 = vrot.slane %v994, 4
          %v996 = vmax.f32 %v994, %v995
          %v997 = vrot.slane %v996, 2
          %v998 = vmax.f32 %v996, %v997
          %v999 = vrot.slane %v998, 1
          %v1000 = vmax.f32 %v998, %v999
          %v1001 = vmax.f32 %v979, %v1000
          %1002 = vst [vmem:[#allocation3] sm:$0x1] %v1001
        $region84: #{gcn_with_glob_forward.1} parent=79 // pred_fallthru
          _
        // Predicated region
        $region85: #{gcn_with_glob_forward.1} parent=79 // pred_check
          %p1003 = pneg %p553
        $region86: #{gcn_with_glob_forward.1} parent=79 // pred_check_branch
          %1005 = sbr.rel (%p1003) target = $region88
        $region87: #{gcn_with_glob_forward.1} parent=79 // pred_region
          %v1006 = vlaneseq
          %v1007 = vshrl.u32 %v1006, 7
          %v1008 = vadd.s32 %v1007, 8
          %v1009 = vadd.s32 %v1007, 16
          %v1010 = vadd.s32 %v1007, 24
          %v1011 = vadd.s32 %v1007, 32
          %v1012 = vadd.s32 %v1007, 40
          %v1013 = vadd.s32 %v1007, 48
          %v1014 = vadd.s32 %v1007, 56
          %v1015 = vadd.s32 %v1007, 64
          %v1016 = vadd.s32 %v1007, 72
          %v1017 = vadd.s32 %v1007, 80
          %v1018 = vadd.s32 %v1007, 88
          %v1019 = vadd.s32 %v1007, 96
          %v1020 = vadd.s32 %v1007, 104
          %v1021 = vadd.s32 %v1007, 112
          %v1022 = vadd.s32 %v1007, 120
          %v1023 = vstv %s971
          %v1024 = vadd.s32 %v1023, %v1007
          %v1025 = vadd.s32 %v1023, %v1008
          %v1026 = vadd.s32 %v1023, %v1009
          %v1027 = vadd.s32 %v1023, %v1010
          %v1028 = vadd.s32 %v1023, %v1011
          %v1029 = vadd.s32 %v1023, %v1012
          %v1030 = vadd.s32 %v1023, %v1013
          %v1031 = vadd.s32 %v1023, %v1014
          %v1032 = vadd.s32 %v1023, %v1015
          %v1033 = vadd.s32 %v1023, %v1016
          %v1034 = vadd.s32 %v1023, %v1017
          %v1035 = vadd.s32 %v1023, %v1018
          %v1036 = vadd.s32 %v1023, %v1019
          %v1037 = vadd.s32 %v1023, %v1020
          %v1038 = vadd.s32 %v1023, %v1021
          %v1039 = vadd.s32 %v1023, %v1022
          %vm1040 = vcmp.lt.s32.totalorder %v1024, 32
          %vm1041 = vcmp.lt.s32.totalorder %v1025, 32
          %vm1042 = vcmp.lt.s32.totalorder %v1026, 32
          %vm1043 = vcmp.lt.s32.totalorder %v1027, 32
          %vm1044 = vcmp.lt.s32.totalorder %v1028, 32
          %vm1045 = vcmp.lt.s32.totalorder %v1029, 32
          %vm1046 = vcmp.lt.s32.totalorder %v1030, 32
          %vm1047 = vcmp.lt.s32.totalorder %v1031, 32
          %vm1048 = vcmp.lt.s32.totalorder %v1032, 32
          %vm1049 = vcmp.lt.s32.totalorder %v1033, 32
          %vm1050 = vcmp.lt.s32.totalorder %v1034, 32
          %vm1051 = vcmp.lt.s32.totalorder %v1035, 32
          %vm1052 = vcmp.lt.s32.totalorder %v1036, 32
          %vm1053 = vcmp.lt.s32.totalorder %v1037, 32
          %vm1054 = vcmp.lt.s32.totalorder %v1038, 32
          %vm1055 = vcmp.lt.s32.totalorder %v1039, 32
          %v1056 = vsel %vm1040, 1, 0
          %v1057 = vsel %vm1041, 1, 0
          %v1058 = vsel %vm1042, 1, 0
          %v1059 = vsel %vm1043, 1, 0
          %v1060 = vsel %vm1044, 1, 0
          %v1061 = vsel %vm1045, 1, 0
          %v1062 = vsel %vm1046, 1, 0
          %v1063 = vsel %vm1047, 1, 0
          %v1064 = vsel %vm1048, 1, 0
          %v1065 = vsel %vm1049, 1, 0
          %v1066 = vsel %vm1050, 1, 0
          %v1067 = vsel %vm1051, 1, 0
          %v1068 = vsel %vm1052, 1, 0
          %v1069 = vsel %vm1053, 1, 0
          %v1070 = vsel %vm1054, 1, 0
          %v1071 = vsel %vm1055, 1, 0
          %vm1072 = vcmp.eq.s32.totalorder %v1056, 1
          %vm1073 = vcmp.eq.s32.totalorder %v1057, 1
          %vm1074 = vcmp.eq.s32.totalorder %v1058, 1
          %vm1075 = vcmp.eq.s32.totalorder %v1059, 1
          %vm1076 = vcmp.eq.s32.totalorder %v1060, 1
          %vm1077 = vcmp.eq.s32.totalorder %v1061, 1
          %vm1078 = vcmp.eq.s32.totalorder %v1062, 1
          %vm1079 = vcmp.eq.s32.totalorder %v1063, 1
          %vm1080 = vcmp.eq.s32.totalorder %v1064, 1
          %vm1081 = vcmp.eq.s32.totalorder %v1065, 1
          %vm1082 = vcmp.eq.s32.totalorder %v1066, 1
          %vm1083 = vcmp.eq.s32.totalorder %v1067, 1
          %vm1084 = vcmp.eq.s32.totalorder %v1068, 1
          %vm1085 = vcmp.eq.s32.totalorder %v1069, 1
          %vm1086 = vcmp.eq.s32.totalorder %v1070, 1
          %vm1087 = vcmp.eq.s32.totalorder %v1071, 1
          %v1088 = vsel %vm1072, %v909, -inf
          %v1089 = vsel %vm1073, %v912, -inf
          %v1090 = vsel %vm1074, %v917, -inf
          %v1091 = vsel %vm1075, %v920, -inf
          %v1092 = vsel %vm1076, %v925, -inf
          %v1093 = vsel %vm1077, %v928, -inf
          %v1094 = vsel %vm1078, %v933, -inf
          %v1095 = vsel %vm1079, %v936, -inf
          %v1096 = vsel %vm1080, %v941, -inf
          %v1097 = vsel %vm1081, %v944, -inf
          %v1098 = vsel %vm1082, %v949, -inf
          %v1099 = vsel %vm1083, %v952, -inf
          %v1100 = vsel %vm1084, %v957, -inf
          %v1101 = vsel %vm1085, %v960, -inf
          %v1102 = vsel %vm1086, %v965, -inf
          %v1103 = vsel %vm1087, %v968, -inf
          %v1104 = vld [vmem:[#allocation3] sm:$0x1]
          %v1105 = vmax.f32 %v1088, %v1092
          %v1106 = vmax.f32 %v1089, %v1093
          %v1107 = vmax.f32 %v1090, %v1094
          %v1108 = vmax.f32 %v1091, %v1095
          %v1109 = vmax.f32 %v1105, %v1096
          %v1110 = vmax.f32 %v1106, %v1097
          %v1111 = vmax.f32 %v1107, %v1098
          %v1112 = vmax.f32 %v1108, %v1099
          %v1113 = vmax.f32 %v1109, %v1100
          %v1114 = vmax.f32 %v1110, %v1101
          %v1115 = vmax.f32 %v1111, %v1102
          %v1116 = vmax.f32 %v1112, %v1103
          %v1117 = vmax.f32 %v1113, %v1114
          %v1118 = vmax.f32 %v1115, %v1116
          %v1119 = vmax.f32 %v1117, %v1118
          %v1120 = vrot.slane %v1119, 4
          %v1121 = vmax.f32 %v1119, %v1120
          %v1122 = vrot.slane %v1121, 2
          %v1123 = vmax.f32 %v1121, %v1122
          %v1124 = vrot.slane %v1123, 1
          %v1125 = vmax.f32 %v1123, %v1124
          %v1126 = vmax.f32 %v1104, %v1125
          %1127 = vst [vmem:[#allocation3] sm:$0x1] %v1126
        $region88: #{gcn_with_glob_forward.1} parent=79 // pred_fallthru
          _
        %v1128 = vmax.f32 %v909, 0.0
        %v1129 = vmax.f32 %v912, 0.0
        %v1130 = vmax.f32 %v917, 0.0
        %v1131 = vmax.f32 %v920, 0.0
        %v1132 = vmax.f32 %v925, 0.0
        %v1133 = vmax.f32 %v928, 0.0
        %v1134 = vmax.f32 %v933, 0.0
        %v1135 = vmax.f32 %v936, 0.0
        %v1136 = vmax.f32 %v941, 0.0
        %v1137 = vmax.f32 %v944, 0.0
        %v1138 = vmax.f32 %v949, 0.0
        %v1139 = vmax.f32 %v952, 0.0
        %v1140 = vmax.f32 %v957, 0.0
        %v1141 = vmax.f32 %v960, 0.0
        %v1142 = vmax.f32 %v965, 0.0
        %v1143 = vmax.f32 %v968, 0.0
        %v1144 = vld [vmem:[%s504] sm:$0xff]
        %v1145 = vld [vmem:[%s504 + $0x8] sm:$0xff]
        %v1146 = vld [vmem:[%s504 + $0x10] sm:$0xff]
        %v1147 = vld [vmem:[%s504 + $0x18] sm:$0xff]
        %v1148 = vld [vmem:[%s504 + $0x20] sm:$0xff]
        %v1149 = vld [vmem:[%s504 + $0x28] sm:$0xff]
        %v1150 = vld [vmem:[%s504 + $0x30] sm:$0xff]
        %v1151 = vld [vmem:[%s504 + $0x38] sm:$0xff]
        %v1152 = vld [vmem:[%s504 + $0x40] sm:$0xff]
        %v1153 = vld [vmem:[%s504 + $0x48] sm:$0xff]
        %v1154 = vld [vmem:[%s504 + $0x50] sm:$0xff]
        %v1155 = vld [vmem:[%s504 + $0x58] sm:$0xff]
        %v1156 = vld [vmem:[%s504 + $0x60] sm:$0xff]
        %v1157 = vld [vmem:[%s504 + $0x68] sm:$0xff]
        %v1158 = vld [vmem:[%s504 + $0x70] sm:$0xff]
        %v1159 = vld [vmem:[%s504 + $0x78] sm:$0xff]
        %1160 = vmatprep.subr.mxu0 0.0
        %1161 = vmatpush1.msra.mxu0 %v1144
        %1162 = vmatprep.subr.mxu0 0.0
        %1163 = vmatpush1.msra.mxu0 %v1145
        %1164 = vmatprep.subr.mxu0 0.0
        %1165 = vmatpush1.msra.mxu0 %v1146
        %1166 = vmatprep.subr.mxu0 0.0
        %1167 = vmatpush1.msra.mxu0 %v1147
        %1168 = vmatprep.subr.mxu0 0.0
        %1169 = vmatpush1.msra.mxu0 %v1148
        %1170 = vmatprep.subr.mxu0 0.0
        %1171 = vmatpush1.msra.mxu0 %v1149
        %1172 = vmatprep.subr.mxu0 0.0
        %1173 = vmatpush1.msra.mxu0 %v1150
        %1174 = vmatprep.subr.mxu0 0.0
        %1175 = vmatpush1.msra.mxu0 %v1151
        %1176 = vmatprep.subr.mxu0 0.0
        %1177 = vmatpush1.msra.mxu0 %v1152
        %1178 = vmatprep.subr.mxu0 0.0
        %1179 = vmatpush1.msra.mxu0 %v1153
        %1180 = vmatprep.subr.mxu0 0.0
        %1181 = vmatpush1.msra.mxu0 %v1154
        %1182 = vmatprep.subr.mxu0 0.0
        %1183 = vmatpush1.msra.mxu0 %v1155
        %1184 = vmatprep.subr.mxu0 0.0
        %1185 = vmatpush1.msra.mxu0 %v1156
        %1186 = vmatprep.subr.mxu0 0.0
        %1187 = vmatpush1.msra.mxu0 %v1157
        %1188 = vmatprep.subr.mxu0 0.0
        %1189 = vmatpush1.msra.mxu0 %v1158
        %1190 = vmatprep.subr.mxu0 0.0
        %1191 = vmatpush1.msra.mxu0 %v1159
        %1192 = vmatprep.subr.mxu0 0.0
        %1193 = vmatpush1.msra.mxu0 0.0
        %1194 = vmatprep.subr.mxu0 0.0
        %1195 = vmatpush1.msra.mxu0 0.0
        %1196 = vmatprep.subr.mxu0 0.0
        %1197 = vmatpush1.msra.mxu0 0.0
        %1198 = vmatprep.subr.mxu0 0.0
        %1199 = vmatpush1.msra.mxu0 0.0
        %1200 = vmatprep.subr.mxu0 0.0
        %1201 = vmatpush1.msra.mxu0 0.0
        %1202 = vmatprep.subr.mxu0 0.0
        %1203 = vmatpush1.msra.mxu0 0.0
        %1204 = vmatprep.subr.mxu0 0.0
        %1205 = vmatpush1.msra.mxu0 0.0
        %1206 = vmatprep.subr.mxu0 0.0
        %1207 = vmatpush1.msra.mxu0 0.0
        %1208 = vmatprep.subr.mxu0 0.0
        %1209 = vmatpush1.msra.mxu0 0.0
        %1210 = vmatprep.subr.mxu0 0.0
        %1211 = vmatpush1.msra.mxu0 0.0
        %1212 = vmatprep.subr.mxu0 0.0
        %1213 = vmatpush1.msra.mxu0 0.0
        %1214 = vmatprep.subr.mxu0 0.0
        %1215 = vmatpush1.msra.mxu0 0.0
        %1216 = vmatprep.subr.mxu0 0.0
        %1217 = vmatpush1.msra.mxu0 0.0
        %1218 = vmatprep.subr.mxu0 0.0
        %1219 = vmatpush1.msra.mxu0 0.0
        %1220 = vmatprep.subr.mxu0 0.0
        %1221 = vmatpush1.msra.mxu0 0.0
        %1222 = vmatprep.subr.mxu0 0.0
        %1223 = vmatpush1.msra.mxu0 0.0
        %1224 = vmatprep.mubr.f32.mxu0 0.0
        %1225 = vmatmul.mubr.f32.gmra.mrb[0].mxu0 %v1128
        %v1226 = vpop.f32.mrb[0].mxu0
        %v1227 = vadd.f32 0.0, %v1226
        %v1228 = vpop.f32.mrb[0].mxu0
        %1229 = vmatprep.mubr.f32.mxu0 0.0
        %1230 = vmatmul.mubr.f32.gmra.mrb[0].mxu0 %v1129
        %v1231 = vpop.f32.mrb[0].mxu0
        %v1232 = vadd.f32 0.0, %v1231
        %v1233 = vpop.f32.mrb[0].mxu0
        %1234 = vmatprep.mubr.f32.mxu0 0.0
        %1235 = vmatmul.mubr.f32.gmra.mrb[0].mxu0 %v1130
        %v1236 = vpop.f32.mrb[0].mxu0
        %v1237 = vadd.f32 0.0, %v1236
        %v1238 = vpop.f32.mrb[0].mxu0
        %1239 = vmatprep.mubr.f32.mxu0 0.0
        %1240 = vmatmul.mubr.f32.gmra.mrb[0].mxu0 %v1131
        %v1241 = vpop.f32.mrb[0].mxu0
        %v1242 = vadd.f32 0.0, %v1241
        %v1243 = vpop.f32.mrb[0].mxu0
        %1244 = vmatprep.mubr.f32.mxu0 0.0
        %1245 = vmatmul.mubr.f32.gmra.mrb[0].mxu0 %v1132
        %v1246 = vpop.f32.mrb[0].mxu0
        %v1247 = vadd.f32 0.0, %v1246
        %v1248 = vpop.f32.mrb[0].mxu0
        %1249 = vmatprep.mubr.f32.mxu0 0.0
        %1250 = vmatmul.mubr.f32.gmra.mrb[0].mxu0 %v1133
        %v1251 = vpop.f32.mrb[0].mxu0
        %v1252 = vadd.f32 0.0, %v1251
        %v1253 = vpop.f32.mrb[0].mxu0
        %1254 = vmatprep.mubr.f32.mxu0 0.0
        %1255 = vmatmul.mubr.f32.gmra.mrb[0].mxu0 %v1134
        %v1256 = vpop.f32.mrb[0].mxu0
        %v1257 = vadd.f32 0.0, %v1256
        %v1258 = vpop.f32.mrb[0].mxu0
        %1259 = vmatprep.mubr.f32.mxu0 0.0
        %1260 = vmatmul.mubr.f32.gmra.mrb[0].mxu0 %v1135
        %v1261 = vpop.f32.mrb[0].mxu0
        %v1262 = vadd.f32 0.0, %v1261
        %v1263 = vpop.f32.mrb[0].mxu0
        %1264 = vmatprep.mubr.f32.mxu0 0.0
        %1265 = vmatmul.mubr.f32.gmra.mrb[0].mxu0 %v1136
        %v1266 = vpop.f32.mrb[0].mxu0
        %v1267 = vadd.f32 0.0, %v1266
        %v1268 = vpop.f32.mrb[0].mxu0
        %1269 = vmatprep.mubr.f32.mxu0 0.0
        %1270 = vmatmul.mubr.f32.gmra.mrb[0].mxu0 %v1137
        %v1271 = vpop.f32.mrb[0].mxu0
        %v1272 = vadd.f32 0.0, %v1271
        %v1273 = vpop.f32.mrb[0].mxu0
        %1274 = vmatprep.mubr.f32.mxu0 0.0
        %1275 = vmatmul.mubr.f32.gmra.mrb[0].mxu0 %v1138
        %v1276 = vpop.f32.mrb[0].mxu0
        %v1277 = vadd.f32 0.0, %v1276
        %v1278 = vpop.f32.mrb[0].mxu0
        %1279 = vmatprep.mubr.f32.mxu0 0.0
        %1280 = vmatmul.mubr.f32.gmra.mrb[0].mxu0 %v1139
        %v1281 = vpop.f32.mrb[0].mxu0
        %v1282 = vadd.f32 0.0, %v1281
        %v1283 = vpop.f32.mrb[0].mxu0
        %1284 = vmatprep.mubr.f32.mxu0 0.0
        %1285 = vmatmul.mubr.f32.gmra.mrb[0].mxu0 %v1140
        %v1286 = vpop.f32.mrb[0].mxu0
        %v1287 = vadd.f32 0.0, %v1286
        %v1288 = vpop.f32.mrb[0].mxu0
        %1289 = vmatprep.mubr.f32.mxu0 0.0
        %1290 = vmatmul.mubr.f32.gmra.mrb[0].mxu0 %v1141
        %v1291 = vpop.f32.mrb[0].mxu0
        %v1292 = vadd.f32 0.0, %v1291
        %v1293 = vpop.f32.mrb[0].mxu0
        %1294 = vmatprep.mubr.f32.mxu0 0.0
        %1295 = vmatmul.mubr.f32.gmra.mrb[0].mxu0 %v1142
        %v1296 = vpop.f32.mrb[0].mxu0
        %v1297 = vadd.f32 0.0, %v1296
        %v1298 = vpop.f32.mrb[0].mxu0
        %1299 = vmatprep.mubr.f32.mxu0 0.0
        %1300 = vmatmul.mubr.f32.gmra.mrb[0].mxu0 %v1143
        %v1301 = vpop.f32.mrb[0].mxu0
        %v1302 = vadd.f32 0.0, %v1301
        %v1303 = vpop.f32.mrb[0].mxu0
        %1304 = vdwg.mxu0
        %v1305 = vpack.c.bf16 %v1232, %v1227
        %v1306 = vpack.c.bf16 %v1242, %v1237
        %v1307 = vpack.c.bf16 %v1252, %v1247
        %v1308 = vpack.c.bf16 %v1262, %v1257
        %v1309 = vpack.c.bf16 %v1272, %v1267
        %v1310 = vpack.c.bf16 %v1282, %v1277
        %v1311 = vpack.c.bf16 %v1292, %v1287
        %v1312 = vpack.c.bf16 %v1302, %v1297
        %s1313 = sshra.s32 %s971, 4
        %s1314 = sand.u32 %s971, 15
        %s1315 = smul.u32 %s551, 8
        %s1316 = sadd.s32 %s1313, %s1315
        %s1317 = smul.addr %s1316, 8
        %s1318 = scalar_lea.vmem [#allocation2], %s1317
        %1319 = vst [vmem:[%s1318] sm:$0xff] %v1305
        %1320 = vst [vmem:[%s1318 + $0x8] sm:$0xff] %v1306
        %1321 = vst [vmem:[%s1318 + $0x10] sm:$0xff] %v1307
        %1322 = vst [vmem:[%s1318 + $0x18] sm:$0xff] %v1308
        %1323 = vst [vmem:[%s1318 + $0x20] sm:$0xff] %v1309
        %1324 = vst [vmem:[%s1318 + $0x28] sm:$0xff] %v1310
        %1325 = vst [vmem:[%s1318 + $0x30] sm:$0xff] %v1311
        %1326 = vst [vmem:[%s1318 + $0x38] sm:$0xff] %v1312
      $region80: #{gcn_with_glob_forward.1} parent=63 // pred_fallthru
        _
      // Predicated region
      $region89: #{gcn_with_glob_forward.1} parent=63 // pred_check
        _
      $region90: #{gcn_with_glob_forward.1} parent=63 // pred_check_branch
        %1328 = sbr.rel (%p794) target = $region92
      $region91: #{gcn_with_glob_forward.1} parent=63 // pred_region
        %v1329 = vld [vmem:[#allocation4] sm:$0x1]
        %v1330 = vld [vmem:[%s520] sm:$0xff]
        %v1331 = vld [vmem:[%s520 + $0x8] sm:$0xff]
        %v1332 = vld [vmem:[%s520 + $0x10] sm:$0xff]
        %v1333 = vld [vmem:[%s520 + $0x18] sm:$0xff]
        %v1334 = vld [vmem:[%s520 + $0x20] sm:$0xff]
        %v1335 = vld [vmem:[%s520 + $0x28] sm:$0xff]
        %v1336 = vld [vmem:[%s520 + $0x30] sm:$0xff]
        %v1337 = vld [vmem:[%s520 + $0x38] sm:$0xff]
        %v1338 = vld [vmem:[%s520 + $0x40] sm:$0xff]
        %v1339 = vld [vmem:[%s520 + $0x48] sm:$0xff]
        %v1340 = vld [vmem:[%s520 + $0x50] sm:$0xff]
        %v1341 = vld [vmem:[%s520 + $0x58] sm:$0xff]
        %v1342 = vld [vmem:[%s520 + $0x60] sm:$0xff]
        %v1343 = vld [vmem:[%s520 + $0x68] sm:$0xff]
        %v1344 = vld [vmem:[%s520 + $0x70] sm:$0xff]
        %v1345 = vld [vmem:[%s520 + $0x78] sm:$0xff]
        %v1346 = vld [vmem:[%s523] sm:$0x1]
        %1347 = vmatprep.subr.mxu0 0.0
        %1348 = vmatpush1.msra.mxu0 %v1330
        %1349 = vmatprep.subr.mxu0 0.0
        %1350 = vmatpush1.msra.mxu0 %v1331
        %1351 = vmatprep.subr.mxu0 0.0
        %1352 = vmatpush1.msra.mxu0 %v1332
        %1353 = vmatprep.subr.mxu0 0.0
        %1354 = vmatpush1.msra.mxu0 %v1333
        %1355 = vmatprep.subr.mxu0 0.0
        %1356 = vmatpush1.msra.mxu0 %v1334
        %1357 = vmatprep.subr.mxu0 0.0
        %1358 = vmatpush1.msra.mxu0 %v1335
        %1359 = vmatprep.subr.mxu0 0.0
        %1360 = vmatpush1.msra.mxu0 %v1336
        %1361 = vmatprep.subr.mxu0 0.0
        %1362 = vmatpush1.msra.mxu0 %v1337
        %1363 = vmatprep.subr.mxu0 0.0
        %1364 = vmatpush1.msra.mxu0 %v1338
        %1365 = vmatprep.subr.mxu0 0.0
        %1366 = vmatpush1.msra.mxu0 %v1339
        %1367 = vmatprep.subr.mxu0 0.0
        %1368 = vmatpush1.msra.mxu0 %v1340
        %1369 = vmatprep.subr.mxu0 0.0
        %1370 = vmatpush1.msra.mxu0 %v1341
        %1371 = vmatprep.subr.mxu0 0.0
        %1372 = vmatpush1.msra.mxu0 %v1342
        %1373 = vmatprep.subr.mxu0 0.0
        %1374 = vmatpush1.msra.mxu0 %v1343
        %1375 = vmatprep.subr.mxu0 0.0
        %1376 = vmatpush1.msra.mxu0 %v1344
        %1377 = vmatprep.subr.mxu0 0.0
        %1378 = vmatpush1.msra.mxu0 %v1345
        %1379 = vmatprep.subr.mxu0 0.0
        %1380 = vmatpush1.msra.mxu0 0.0
        %1381 = vmatprep.subr.mxu0 0.0
        %1382 = vmatpush1.msra.mxu0 0.0
        %1383 = vmatprep.subr.mxu0 0.0
        %1384 = vmatpush1.msra.mxu0 0.0
        %1385 = vmatprep.subr.mxu0 0.0
        %1386 = vmatpush1.msra.mxu0 0.0
        %1387 = vmatprep.subr.mxu0 0.0
        %1388 = vmatpush1.msra.mxu0 0.0
        %1389 = vmatprep.subr.mxu0 0.0
        %1390 = vmatpush1.msra.mxu0 0.0
        %1391 = vmatprep.subr.mxu0 0.0
        %1392 = vmatpush1.msra.mxu0 0.0
        %1393 = vmatprep.subr.mxu0 0.0
        %1394 = vmatpush1.msra.mxu0 0.0
        %1395 = vmatprep.subr.mxu0 0.0
        %1396 = vmatpush1.msra.mxu0 0.0
        %1397 = vmatprep.subr.mxu0 0.0
        %1398 = vmatpush1.msra.mxu0 0.0
        %1399 = vmatprep.subr.mxu0 0.0
        %1400 = vmatpush1.msra.mxu0 0.0
        %1401 = vmatprep.subr.mxu0 0.0
        %1402 = vmatpush1.msra.mxu0 0.0
        %1403 = vmatprep.subr.mxu0 0.0
        %1404 = vmatpush1.msra.mxu0 0.0
        %1405 = vmatprep.subr.mxu0 0.0
        %1406 = vmatpush1.msra.mxu0 0.0
        %1407 = vmatprep.subr.mxu0 0.0
        %1408 = vmatpush1.msra.mxu0 0.0
        %1409 = vmatprep.subr.mxu0 0.0
        %1410 = vmatpush1.msra.mxu0 0.0
        %1411 = vmatprep.mubr.f32.mxu0 0.0
        %1412 = vmatmul.mubr.f32.gmra.mrb[0].mxu0 %v1329
        %v1413 = vpop.f32.mrb[0].mxu0
        %v1414 = vadd.f32 %v1346, %v1413
        %v1415 = vpop.f32.mrb[0].mxu0
        %1416 = vdwg.mxu0
        %v1417 = vld [vmem:[#allocation3] sm:$0x1]
        %v1418 = vld [vmem:[%s528] sm:$0xff]
        %v1419 = vld [vmem:[%s528 + $0x8] sm:$0xff]
        %v1420 = vld [vmem:[%s528 + $0x10] sm:$0xff]
        %v1421 = vld [vmem:[%s528 + $0x18] sm:$0xff]
        %v1422 = vld [vmem:[%s528 + $0x20] sm:$0xff]
        %v1423 = vld [vmem:[%s528 + $0x28] sm:$0xff]
        %v1424 = vld [vmem:[%s528 + $0x30] sm:$0xff]
        %v1425 = vld [vmem:[%s528 + $0x38] sm:$0xff]
        %v1426 = vld [vmem:[%s528 + $0x40] sm:$0xff]
        %v1427 = vld [vmem:[%s528 + $0x48] sm:$0xff]
        %v1428 = vld [vmem:[%s528 + $0x50] sm:$0xff]
        %v1429 = vld [vmem:[%s528 + $0x58] sm:$0xff]
        %v1430 = vld [vmem:[%s528 + $0x60] sm:$0xff]
        %v1431 = vld [vmem:[%s528 + $0x68] sm:$0xff]
        %v1432 = vld [vmem:[%s528 + $0x70] sm:$0xff]
        %v1433 = vld [vmem:[%s528 + $0x78] sm:$0xff]
        %1434 = vmatprep.subr.mxu0 0.0
        %1435 = vmatpush1.msra.mxu0 %v1418
        %1436 = vmatprep.subr.mxu0 0.0
        %1437 = vmatpush1.msra.mxu0 %v1419
        %1438 = vmatprep.subr.mxu0 0.0
        %1439 = vmatpush1.msra.mxu0 %v1420
        %1440 = vmatprep.subr.mxu0 0.0
        %1441 = vmatpush1.msra.mxu0 %v1421
        %1442 = vmatprep.subr.mxu0 0.0
        %1443 = vmatpush1.msra.mxu0 %v1422
        %1444 = vmatprep.subr.mxu0 0.0
        %1445 = vmatpush1.msra.mxu0 %v1423
        %1446 = vmatprep.subr.mxu0 0.0
        %1447 = vmatpush1.msra.mxu0 %v1424
        %1448 = vmatprep.subr.mxu0 0.0
        %1449 = vmatpush1.msra.mxu0 %v1425
        %1450 = vmatprep.subr.mxu0 0.0
        %1451 = vmatpush1.msra.mxu0 %v1426
        %1452 = vmatprep.subr.mxu0 0.0
        %1453 = vmatpush1.msra.mxu0 %v1427
        %1454 = vmatprep.subr.mxu0 0.0
        %1455 = vmatpush1.msra.mxu0 %v1428
        %1456 = vmatprep.subr.mxu0 0.0
        %1457 = vmatpush1.msra.mxu0 %v1429
        %1458 = vmatprep.subr.mxu0 0.0
        %1459 = vmatpush1.msra.mxu0 %v1430
        %1460 = vmatprep.subr.mxu0 0.0
        %1461 = vmatpush1.msra.mxu0 %v1431
        %1462 = vmatprep.subr.mxu0 0.0
        %1463 = vmatpush1.msra.mxu0 %v1432
        %1464 = vmatprep.subr.mxu0 0.0
        %1465 = vmatpush1.msra.mxu0 %v1433
        %1466 = vmatprep.subr.mxu0 0.0
        %1467 = vmatpush1.msra.mxu0 0.0
        %1468 = vmatprep.subr.mxu0 0.0
        %1469 = vmatpush1.msra.mxu0 0.0
        %1470 = vmatprep.subr.mxu0 0.0
        %1471 = vmatpush1.msra.mxu0 0.0
        %1472 = vmatprep.subr.mxu0 0.0
        %1473 = vmatpush1.msra.mxu0 0.0
        %1474 = vmatprep.subr.mxu0 0.0
        %1475 = vmatpush1.msra.mxu0 0.0
        %1476 = vmatprep.subr.mxu0 0.0
        %1477 = vmatpush1.msra.mxu0 0.0
        %1478 = vmatprep.subr.mxu0 0.0
        %1479 = vmatpush1.msra.mxu0 0.0
        %1480 = vmatprep.subr.mxu0 0.0
        %1481 = vmatpush1.msra.mxu0 0.0
        %1482 = vmatprep.subr.mxu0 0.0
        %1483 = vmatpush1.msra.mxu0 0.0
        %1484 = vmatprep.subr.mxu0 0.0
        %1485 = vmatpush1.msra.mxu0 0.0
        %1486 = vmatprep.subr.mxu0 0.0
        %1487 = vmatpush1.msra.mxu0 0.0
        %1488 = vmatprep.subr.mxu0 0.0
        %1489 = vmatpush1.msra.mxu0 0.0
        %1490 = vmatprep.subr.mxu0 0.0
        %1491 = vmatpush1.msra.mxu0 0.0
        %1492 = vmatprep.subr.mxu0 0.0
        %1493 = vmatpush1.msra.mxu0 0.0
        %1494 = vmatprep.subr.mxu0 0.0
        %1495 = vmatpush1.msra.mxu0 0.0
        %1496 = vmatprep.subr.mxu0 0.0
        %1497 = vmatpush1.msra.mxu0 0.0
        %1498 = vmatprep.mubr.f32.mxu0 0.0
        %1499 = vmatmul.mubr.f32.gmra.mrb[0].mxu0 %v1417
        %v1500 = vpop.f32.mrb[0].mxu0
        %v1501 = vadd.f32 0.0, %v1500
        %v1502 = vpop.f32.mrb[0].mxu0
        %1503 = vdwg.mxu0
        %v1504 = vadd.f32 %v1414, %v1501
        %v1505 = vld [vmem:[%s531] sm:$0x1]
        %v1506 = vadd.f32 %v1504, %v1505
        %1507 = vst [vmem:[#allocation4] sm:$0x1] %v1506
      $region92: #{gcn_with_glob_forward.1} parent=63 // pred_fallthru
        _
      %p1508 = scmp.eq.s32.totalorder %s26, 1
      // Predicated region
      $region93: #{gcn_with_glob_forward.1} parent=63 // pred_check
        %p1509 = pneg %p1508
      $region94: #{gcn_with_glob_forward.1} parent=63 // pred_check_branch
        %1511 = sbr.rel (%p1509) target = $region96
      $region95: #{gcn_with_glob_forward.1} parent=63 // pred_region
        %v1512 = vxor.u32 %v909, 2147483648
        %v1513 = vxor.u32 %v912, 2147483648
        %v1514 = vxor.u32 %v917, 2147483648
        %v1515 = vxor.u32 %v920, 2147483648
        %v1516 = vxor.u32 %v925, 2147483648
        %v1517 = vxor.u32 %v928, 2147483648
        %v1518 = vxor.u32 %v933, 2147483648
        %v1519 = vxor.u32 %v936, 2147483648
        %v1520 = vxor.u32 %v941, 2147483648
        %v1521 = vxor.u32 %v944, 2147483648
        %v1522 = vxor.u32 %v949, 2147483648
        %v1523 = vxor.u32 %v952, 2147483648
        %v1524 = vxor.u32 %v957, 2147483648
        %v1525 = vxor.u32 %v960, 2147483648
        %v1526 = vxor.u32 %v965, 2147483648
        %v1527 = vxor.u32 %v968, 2147483648
        %v1528 = vmul.f32 %v1512, 1.442695
        %v1529 = vpow.pop %v1528
        %v1530 = vmul.f32 %v1513, 1.442695
        %v1531 = vpow.pop %v1530
        %v1532 = vmul.f32 %v1514, 1.442695
        %v1533 = vpow.pop %v1532
        %v1534 = vmul.f32 %v1515, 1.442695
        %v1535 = vpow.pop %v1534
        %v1536 = vmul.f32 %v1516, 1.442695
        %v1537 = vpow.pop %v1536
        %v1538 = vmul.f32 %v1517, 1.442695
        %v1539 = vpow.pop %v1538
        %v1540 = vmul.f32 %v1518, 1.442695
        %v1541 = vpow.pop %v1540
        %v1542 = vmul.f32 %v1519, 1.442695
        %v1543 = vpow.pop %v1542
        %v1544 = vmul.f32 %v1520, 1.442695
        %v1545 = vpow.pop %v1544
        %v1546 = vmul.f32 %v1521, 1.442695
        %v1547 = vpow.pop %v1546
        %v1548 = vmul.f32 %v1522, 1.442695
        %v1549 = vpow.pop %v1548
        %v1550 = vmul.f32 %v1523, 1.442695
        %v1551 = vpow.pop %v1550
        %v1552 = vmul.f32 %v1524, 1.442695
        %v1553 = vpow.pop %v1552
        %v1554 = vmul.f32 %v1525, 1.442695
        %v1555 = vpow.pop %v1554
        %v1556 = vmul.f32 %v1526, 1.442695
        %v1557 = vpow.pop %v1556
        %v1558 = vmul.f32 %v1527, 1.442695
        %v1559 = vpow.pop %v1558
        %v1560 = vadd.f32 %v1529, 1.0
        %v1561 = vadd.f32 %v1531, 1.0
        %v1562 = vadd.f32 %v1533, 1.0
        %v1563 = vadd.f32 %v1535, 1.0
        %v1564 = vadd.f32 %v1537, 1.0
        %v1565 = vadd.f32 %v1539, 1.0
        %v1566 = vadd.f32 %v1541, 1.0
        %v1567 = vadd.f32 %v1543, 1.0
        %v1568 = vadd.f32 %v1545, 1.0
        %v1569 = vadd.f32 %v1547, 1.0
        %v1570 = vadd.f32 %v1549, 1.0
        %v1571 = vadd.f32 %v1551, 1.0
        %v1572 = vadd.f32 %v1553, 1.0
        %v1573 = vadd.f32 %v1555, 1.0
        %v1574 = vadd.f32 %v1557, 1.0
        %v1575 = vadd.f32 %v1559, 1.0
        %v1576 = vrcp.pop %v1560
        %v1577 = vmul.f32 1.0, %v1576
        %v1578 = vrcp.pop %v1561
        %v1579 = vmul.f32 1.0, %v1578
        %v1580 = vrcp.pop %v1562
        %v1581 = vmul.f32 1.0, %v1580
        %v1582 = vrcp.pop %v1563
        %v1583 = vmul.f32 1.0, %v1582
        %v1584 = vrcp.pop %v1564
        %v1585 = vmul.f32 1.0, %v1584
        %v1586 = vrcp.pop %v1565
        %v1587 = vmul.f32 1.0, %v1586
        %v1588 = vrcp.pop %v1566
        %v1589 = vmul.f32 1.0, %v1588
        %v1590 = vrcp.pop %v1567
        %v1591 = vmul.f32 1.0, %v1590
        %v1592 = vrcp.pop %v1568
        %v1593 = vmul.f32 1.0, %v1592
        %v1594 = vrcp.pop %v1569
        %v1595 = vmul.f32 1.0, %v1594
        %v1596 = vrcp.pop %v1570
        %v1597 = vmul.f32 1.0, %v1596
        %v1598 = vrcp.pop %v1571
        %v1599 = vmul.f32 1.0, %v1598
        %v1600 = vrcp.pop %v1572
        %v1601 = vmul.f32 1.0, %v1600
        %v1602 = vrcp.pop %v1573
        %v1603 = vmul.f32 1.0, %v1602
        %v1604 = vrcp.pop %v1574
        %v1605 = vmul.f32 1.0, %v1604
        %v1606 = vrcp.pop %v1575
        %v1607 = vmul.f32 1.0, %v1606
        %1608 = vst [vmem:[%s536] sm:$0xff] %v1577
        %1609 = vst [vmem:[%s536 + $0x8] sm:$0xff] %v1579
        %1610 = vst [vmem:[%s536 + $0x10] sm:$0xff] %v1581
        %1611 = vst [vmem:[%s536 + $0x18] sm:$0xff] %v1583
        %1612 = vst [vmem:[%s536 + $0x20] sm:$0xff] %v1585
        %1613 = vst [vmem:[%s536 + $0x28] sm:$0xff] %v1587
        %1614 = vst [vmem:[%s536 + $0x30] sm:$0xff] %v1589
        %1615 = vst [vmem:[%s536 + $0x38] sm:$0xff] %v1591
        %1616 = vst [vmem:[%s536 + $0x40] sm:$0xff] %v1593
        %1617 = vst [vmem:[%s536 + $0x48] sm:$0xff] %v1595
        %1618 = vst [vmem:[%s536 + $0x50] sm:$0xff] %v1597
        %1619 = vst [vmem:[%s536 + $0x58] sm:$0xff] %v1599
        %1620 = vst [vmem:[%s536 + $0x60] sm:$0xff] %v1601
        %1621 = vst [vmem:[%s536 + $0x68] sm:$0xff] %v1603
        %1622 = vst [vmem:[%s536 + $0x70] sm:$0xff] %v1605
        %1623 = vst [vmem:[%s536 + $0x78] sm:$0xff] %v1607
      $region96: #{gcn_with_glob_forward.1} parent=63 // pred_fallthru
        _
      %s1624 = smul.u32 16, %s27
      %p1625 = scmp.lt.s32.totalorder %s1624, 15
      %s1626 = scalar_select %p1625, %s1624, 15
      %s1627 = smul.addr %s1626, 8
      %s1628 = scalar_lea.vmem %s11, %s1627
      // Predicated region
      $region97: #{gcn_with_glob_forward.1} parent=63 // pred_check
        %p1629 = pneg %p328
      $region98: #{gcn_with_glob_forward.1} parent=63 // pred_check_branch
        %1631 = sbr.rel (%p1629) target = $region100
      $region99: #{gcn_with_glob_forward.1} parent=63 // pred_region
        %s1632 = smul.u32 16, %s27
      $region100: #{gcn_with_glob_forward.1} parent=63 // pred_fallthru
        _
      // Predicated region
      $region101: #{gcn_with_glob_forward.1} parent=63 // pred_check
        %p1633 = pneg %p328
      $region102: #{gcn_with_glob_forward.1} parent=63 // pred_check_branch
        %1635 = sbr.rel (%p1633) target = $region104
      $region103: #{gcn_with_glob_forward.1} parent=63 // pred_region
        %s1636 = smul.u32 16, %s27
        %p1637 = scmp.lt.s32.totalorder %s1636, 15
        %s1638 = scalar_select %p1637, %s1636, 15
        %s1639 = smul.addr %s1638, 8
        %s1640 = scalar_lea.vmem %s11, %s1639
      $region104: #{gcn_with_glob_forward.1} parent=63 // pred_fallthru
        _
    $region64: #{gcn_with_glob_forward.1} parent=5 // pred_fallthru
      _
    %p1641 = scmp.le.s32.totalorder 2, %s17
    // Predicated region
    $region105: #{gcn_with_glob_forward.1} parent=5 // pred_check
      %p1642 = pneg %p1641
    $region106: #{gcn_with_glob_forward.1} parent=5 // pred_check_branch
      %1644 = sbr.rel (%p1642) target = $region108
    $region107: #{gcn_with_glob_forward.1} parent=5 // pred_region
      %s1645 = ssub.s32 %s17, 2
    $region108: #{gcn_with_glob_forward.1} parent=5 // pred_fallthru
      _
  $region6: #{gcn_with_glob_forward.1} parent=0 // loop_footer
    %s21 = sadd.s32 1, %s17
  $region7: #{gcn_with_glob_forward.1} parent=0 // loop_footer_branch
    %16 = sbr.rel target = $region3
  $region8: #{gcn_with_glob_forward.1} parent=0 // loop_exit
    _

</llo_original>
